<compile_context>
chip_gen: v6e
topology: v6e:2x2x1
jax: 0.10.0
libtpu: 0.0.40
codegen_flags: <defaults>
</compile_context>

<pallas_src>
import jax
import jax.numpy as jnp
from jax.experimental import pallas as pl
from jax.experimental.pallas import tpu as pltpu


def _round_up(x, m):
    return (x + m - 1) // m * m


def sae_kernel(x_ref, we_ref, be_ref, wd_ref, bd_ref, xhat_ref, z_ref, acc_ref):
    h = pl.program_id(1)

    @pl.when(h == 0)
    def _():
        acc_ref[...] = jnp.zeros_like(acc_ref)

    # Encoder slab: [tb, D] @ [D, th] -> [tb, th], f32 accumulation on the MXU.
    z_f32 = jnp.dot(x_ref[...], we_ref[...], preferred_element_type=jnp.float32)
    z_f32 = jnp.maximum(z_f32 + be_ref[...], 0.0)           # bias + ReLU
    z_out = z_f32.astype(z_ref.dtype)
    z_ref[...] = z_out                                       # write the slab once

    # Decoder partial product with the *stored* z slab: [tb, th] @ [th, D].
    acc_ref[...] += jnp.dot(z_out.astype(wd_ref.dtype), wd_ref[...],
                            preferred_element_type=jnp.float32)

    @pl.when(h == pl.num_programs(1) - 1)
    def _():
        xhat_ref[...] = (acc_ref[...] + bd_ref[...]).astype(xhat_ref.dtype)


def sparse_autoencoder_forward(x, w_enc, b_enc, w_dec, b_dec, *,
                               tb=None, th=None,
                               compute_dtype=jnp.bfloat16):
    """Pallas forward pass. Returns (x_hat, z), mirroring the PyTorch module."""
    B, D = x.shape
    H = w_enc.shape[1]
    out_dtype = x.dtype

    # ---- tile selection -----------------------------------------------------
    if tb is None:
        if B >= 512:
            tb = 256
        elif B >= 256:
            tb = 128            # keeps >= 2 batch steps for the 2nd TensorCore
        else:
            tb = min(_round_up(B, 8), 128)
    if th is None:
        h128 = _round_up(H, 128)
        th = 128
        for cand in range(512, 0, -128):    # biggest lane-multiple tile <= 512
            if h128 % cand == 0:
                th = cand
                break

    Bp = _round_up(B, tb)
    Hp = _round_up(H, th)

    # ---- operand prep (cast + pad) ------------------------------------------
    xc = x.astype(compute_dtype)
    wec = w_enc.astype(compute_dtype)
    wdc = w_dec.astype(compute_dtype)
    be = b_enc.astype(jnp.float32)
    bd = b_dec.astype(jnp.float32)
    if Bp != B:
        xc = jnp.pad(xc, ((0, Bp - B), (0, 0)))
    if Hp != H:
        wec = jnp.pad(wec, ((0, 0), (0, Hp - H)))
        wdc = jnp.pad(wdc, ((0, Hp - H), (0, 0)))
        be = jnp.pad(be, (0, Hp - H))
    be2 = be.reshape(1, Hp)
    bd2 = bd.reshape(1, D)

    # ---- compiler hints -----------------------------------------------------
    csize = jnp.dtype(compute_dtype).itemsize
    osize = jnp.dtype(out_dtype).itemsize
    tile_bytes = (tb * D * csize + D * th * csize + th * 4 +
                  th * D * csize + D * 4 + tb * D * osize + tb * th * osize)
    vmem_needed = 2 * tile_bytes + tb * D * 4           # double-buffered + acc
    vmem_limit = int(min(64 * 1024 * 1024,
                         max(32 * 1024 * 1024, 1.5 * vmem_needed)))

    cost = pl.CostEstimate(
        flops=4 * Bp * D * Hp,                            # two matmuls
        transcendentals=0,
        bytes_accessed=(Bp * D * csize + D * Hp * csize + Hp * D * csize +
                        Hp * 4 + D * 4 + Bp * D * osize + Bp * Hp * osize),
    )

    # ---- pallas call --------------------------------------------------------
    x_hat, z = pl.pallas_call(
        sae_kernel,
        out_shape=(
            jax.ShapeDtypeStruct((Bp, D), out_dtype),     # x_hat
            jax.ShapeDtypeStruct((Bp, Hp), out_dtype),    # z
        ),
        grid_spec=pltpu.PrefetchScalarGridSpec(
            num_scalar_prefetch=0,
            grid=(Bp // tb, Hp // th),
            in_specs=[
                pl.BlockSpec((tb, D), lambda i, h: (i, 0)),   # x tile
                pl.BlockSpec((D, th), lambda i, h: (0, h)),   # W_enc slab
                pl.BlockSpec((1, th), lambda i, h: (0, h)),   # b_enc slab
                pl.BlockSpec((th, D), lambda i, h: (h, 0)),   # W_dec slab
                pl.BlockSpec((1, D), lambda i, h: (0, 0)),    # b_dec
            ],
            out_specs=[
                pl.BlockSpec((tb, D), lambda i, h: (i, 0)),   # x_hat (accumulated)
                pl.BlockSpec((tb, th), lambda i, h: (i, h)),  # z slab
            ],
            scratch_shapes=[pltpu.VMEM((tb, D), jnp.float32)],
        ),
        compiler_params=pltpu.CompilerParams(
            dimension_semantics=("parallel", "arbitrary"),
            vmem_limit_bytes=vmem_limit,
        ),
        cost_estimate=cost,
    )(xc, wec, be2, wdc, bd2)

    if Bp != B:
        x_hat = x_hat[:B]
        z = z[:B]
    if Hp != H:
        z = z[:, :H]
    return x_hat, z


def sae_loss(x, x_hat, z, sparsity_lambda=0.005):
    """Pure-JAX loss identical to the PyTorch module's loss()."""
    recon_loss = jnp.mean((x_hat - x) ** 2)
    sparsity_loss = sparsity_lambda * jnp.mean(jnp.abs(z))
    return recon_loss + sparsity_loss


def init_params(key, input_dim, hidden_dim, dtype=jnp.float32):
    """Deterministic init mimicking nn.Linear's U(-1/sqrt(fan_in), 1/sqrt(fan_in))."""
    k1, k2, k3, k4 = jax.random.split(key, 4)
    bound_e = 1.0 / jnp.sqrt(jnp.float32(input_dim))
    bound_d = 1.0 / jnp.sqrt(jnp.float32(hidden_dim))
    # Stored already-transposed relative to PyTorch's (out, in) layout.
    w_enc = jax.random.uniform(k1, (input_dim, hidden_dim), dtype, -bound_e, bound_e)
    b_enc = jax.random.uniform(k2, (hidden_dim,), dtype, -bound_e, bound_e)
    w_dec = jax.random.uniform(k3, (hidden_dim, input_dim), dtype, -bound_d, bound_d)
    b_dec = jax.random.uniform(k4, (input_dim,), dtype, -bound_d, bound_d)
    return w_enc, b_enc, w_dec, b_dec


if __name__ == "__main__":
    # B=200 (non-tile-multiple, exercises padding), D=256, module-default H=2304.
    B, INPUT_DIM, HIDDEN_DIM = 200, 256, 2304

    key = jax.random.PRNGKey(0)
    kx, kp = jax.random.split(key)
    x = jax.random.normal(kx, (B, INPUT_DIM), jnp.float32)
    w_enc, b_enc, w_dec, b_dec = init_params(kp, INPUT_DIM, HIDDEN_DIM)

    x_hat, z = sparse_autoencoder_forward(x, w_enc, b_enc, w_dec, b_dec)
    x_hat, z = jax.block_until_ready((x_hat, z))
    assert x_hat.shape == (B, INPUT_DIM) and z.shape == (B, HIDDEN_DIM)

    # Reference for the bf16-MXU path (same operand precision, f32 accumulation).
    xc = x.astype(jnp.bfloat16)
    wec = w_enc.astype(jnp.bfloat16)
    wdc = w_dec.astype(jnp.bfloat16)
    z_ref = jnp.maximum(
        jnp.dot(xc, wec, preferred_element_type=jnp.float32) + b_enc, 0.0)
    xhat_ref = jnp.dot(z_ref.astype(jnp.bfloat16), wdc,
                       preferred_element_type=jnp.float32) + b_dec
    assert jnp.allclose(z, z_ref, atol=2e-3, rtol=2e-3)
    assert jnp.allclose(x_hat, xhat_ref, atol=2e-3, rtol=2e-3)

    # Coarse sanity check against the full-f32 module semantics.
    z_f32 = jnp.maximum(x @ w_enc + b_enc, 0.0)
    xhat_f32 = z_f32 @ w_dec + b_dec
    assert jnp.allclose(z, z_f32, atol=5e-2, rtol=5e-2)
    assert jnp.allclose(x_hat, xhat_f32, atol=5e-2, rtol=5e-2)

    # Loss (pure JAX, matches module.loss) just to show the full module surface.
    _ = jax.block_until_ready(sae_loss(x, x_hat, z))

    print("KERNEL_OK")
</pallas_src>

<mosaic_0001>
module attributes {stable_mosaic.version = 11 : i64} {
  func.func @sae_kernel(%arg0: i32, %arg1: i32, %arg2: memref<128x256xbf16, #tpu.memory_space<vmem>>, %arg3: memref<256x384xbf16, #tpu.memory_space<vmem>>, %arg4: memref<1x384xf32, #tpu.memory_space<vmem>>, %arg5: memref<384x256xbf16, #tpu.memory_space<vmem>>, %arg6: memref<1x256xf32, #tpu.memory_space<vmem>>, %arg7: memref<128x256xf32, #tpu.memory_space<vmem>>, %arg8: memref<128x384xf32, #tpu.memory_space<vmem>>, %arg9: memref<128x256xf32, #tpu.memory_space<vmem>>) attributes {dimension_semantics = [#tpu.dimension_semantics<parallel>, #tpu.dimension_semantics<arbitrary>], iteration_bounds = array<i64: 2, 6>, scalar_prefetch = 0 : i64, scratch_operands = 1 : i64, tpu.core_type = #tpu.core_type<tc>, window_params = [{transform_indices = @transform_0, window_bounds = array<i64: 128, 256>}, {transform_indices = @transform_1, window_bounds = array<i64: 256, 384>}, {transform_indices = @transform_2, window_bounds = array<i64: 1, 384>}, {transform_indices = @transform_3, window_bounds = array<i64: 384, 256>}, {pipeline_mode = #tpu.pipeline_mode<synchronous>, transform_indices = @transform_4, window_bounds = array<i64: 1, 256>}, {transform_indices = @transform_5, window_bounds = array<i64: 128, 256>}, {transform_indices = @transform_6, window_bounds = array<i64: 128, 384>}]} {
    %c0_i32 = arith.constant 0 : i32
    %0 = arith.cmpi eq, %arg1, %c0_i32 : i32
    %1 = arith.extui %0 : i1 to i32
    %c0_i32_0 = arith.constant 0 : i32
    %2 = arith.cmpi ne, %1, %c0_i32_0 : i32
    scf.if %2 {
      %cst_17 = arith.constant 0.000000e+00 : f32
      %21 = vector.broadcast %cst_17 : f32 to vector<128x256xf32>
      %c0_18 = arith.constant 0 : index
      %c0_19 = arith.constant 0 : index
      %22 = vector.load %arg9[%c0_18, %c0_19] : memref<128x256xf32, #tpu.memory_space<vmem>>, vector<128x256xf32>
      tpu.vector_store %arg9[%c0_18, %c0_19], %21 {strides = array<i32>} : memref<128x256xf32, #tpu.memory_space<vmem>>, vector<128x256xf32>,
    } else {
    }
    %c0 = arith.constant 0 : index
    %c0_1 = arith.constant 0 : index
    %3 = vector.load %arg2[%c0, %c0_1] : memref<128x256xbf16, #tpu.memory_space<vmem>>, vector<128x256xbf16>
    %c0_2 = arith.constant 0 : index
    %c0_3 = arith.constant 0 : index
    %4 = vector.load %arg3[%c0_2, %c0_3] : memref<256x384xbf16, #tpu.memory_space<vmem>>, vector<256x384xbf16>
    %cst = arith.constant dense<0.000000e+00> : vector<128x384xf32>
    %5 = tpu.matmul %3, %4, %cst {dimension_numbers = #tpu.dot_dimension_numbers<[1], [0], [0], [1], [0, 0, 1, 1], [], []>} : vector<128x256xbf16>, vector<256x384xbf16>, vector<128x384xf32> -> vector<128x384xf32>
    %c0_4 = arith.constant 0 : index
    %c0_5 = arith.constant 0 : index
    %6 = vector.load %arg4[%c0_4, %c0_5] : memref<1x384xf32, #tpu.memory_space<vmem>>, vector<1x384xf32>
    %7 = vector.broadcast %6 : vector<1x384xf32> to vector<128x384xf32>
    %8 = arith.addf %5, %7 : vector<128x384xf32>
    %cst_6 = arith.constant 0.000000e+00 : f32
    %9 = vector.broadcast %cst_6 : f32 to vector<128x384xf32>
    %10 = arith.maximumf %8, %9 : vector<128x384xf32>
    %c0_7 = arith.constant 0 : index
    %c0_8 = arith.constant 0 : index
    %11 = vector.load %arg8[%c0_7, %c0_8] : memref<128x384xf32, #tpu.memory_space<vmem>>, vector<128x384xf32>
    tpu.vector_store %arg8[%c0_7, %c0_8], %10 {strides = array<i32>} : memref<128x384xf32, #tpu.memory_space<vmem>>, vector<128x384xf32>,
    %c0_9 = arith.constant 0 : index
    %c0_10 = arith.constant 0 : index
    %12 = vector.load %arg9[%c0_9, %c0_10] : memref<128x256xf32, #tpu.memory_space<vmem>>, vector<128x256xf32>
    %13 = arith.truncf %10 : vector<128x384xf32> to vector<128x384xbf16>
    %c0_11 = arith.constant 0 : index
    %c0_12 = arith.constant 0 : index
    %14 = vector.load %arg5[%c0_11, %c0_12] : memref<384x256xbf16, #tpu.memory_space<vmem>>, vector<384x256xbf16>
    %cst_13 = arith.constant dense<0.000000e+00> : vector<128x256xf32>
    %15 = tpu.matmul %13, %14, %cst_13 {dimension_numbers = #tpu.dot_dimension_numbers<[1], [0], [0], [1], [0, 0, 1, 1], [], []>} : vector<128x384xbf16>, vector<384x256xbf16>, vector<128x256xf32> -> vector<128x256xf32>
    %16 = arith.addf %12, %15 : vector<128x256xf32>
    %c0_14 = arith.constant 0 : index
    %c0_15 = arith.constant 0 : index
    %17 = vector.load %arg9[%c0_14, %c0_15] : memref<128x256xf32, #tpu.memory_space<vmem>>, vector<128x256xf32>
    tpu.vector_store %arg9[%c0_14, %c0_15], %16 {strides = array<i32>} : memref<128x256xf32, #tpu.memory_space<vmem>>, vector<128x256xf32>,
    %c5_i32 = arith.constant 5 : i32
    %18 = arith.cmpi eq, %arg1, %c5_i32 : i32
    %19 = arith.extui %18 : i1 to i32
    %c0_i32_16 = arith.constant 0 : i32
    %20 = arith.cmpi ne, %19, %c0_i32_16 : i32
    scf.if %20 {
      %c0_17 = arith.constant 0 : index
      %c0_18 = arith.constant 0 : index
      %21 = vector.load %arg9[%c0_17, %c0_18] : memref<128x256xf32, #tpu.memory_space<vmem>>, vector<128x256xf32>
      %c0_19 = arith.constant 0 : index
      %c0_20 = arith.constant 0 : index
      %22 = vector.load %arg6[%c0_19, %c0_20] : memref<1x256xf32, #tpu.memory_space<vmem>>, vector<1x256xf32>
      %23 = vector.broadcast %22 : vector<1x256xf32> to vector<128x256xf32>
      %24 = arith.addf %21, %23 : vector<128x256xf32>
      %c0_21 = arith.constant 0 : index
      %c0_22 = arith.constant 0 : index
      %25 = vector.load %arg7[%c0_21, %c0_22] : memref<128x256xf32, #tpu.memory_space<vmem>>, vector<128x256xf32>
      tpu.vector_store %arg7[%c0_21, %c0_22], %24 {strides = array<i32>} : memref<128x256xf32, #tpu.memory_space<vmem>>, vector<128x256xf32>,
    } else {
    }
    return
  }
  func.func @transform_0(%arg0: i32, %arg1: i32) -> (i32, i32) {
    %c0_i32 = arith.constant 0 : i32
    %c0_i32_0 = arith.constant 0 : i32
    return %arg0, %c0_i32 : i32, i32
  }
  func.func @transform_1(%arg0: i32, %arg1: i32) -> (i32, i32) {
    %c0_i32 = arith.constant 0 : i32
    %c0_i32_0 = arith.constant 0 : i32
    return %c0_i32, %arg1 : i32, i32
  }
  func.func @transform_2(%arg0: i32, %arg1: i32) -> (i32, i32) {
    %c0_i32 = arith.constant 0 : i32
    %c0_i32_0 = arith.constant 0 : i32
    return %c0_i32, %arg1 : i32, i32
  }
  func.func @transform_3(%arg0: i32, %arg1: i32) -> (i32, i32) {
    %c0_i32 = arith.constant 0 : i32
    %c0_i32_0 = arith.constant 0 : i32
    return %arg1, %c0_i32 : i32, i32
  }
  func.func @transform_4(%arg0: i32, %arg1: i32) -> (i32, i32) {
    %c0_i32 = arith.constant 0 : i32
    %c0_i32_0 = arith.constant 0 : i32
    %c0_i32_1 = arith.constant 0 : i32
    return %c0_i32, %c0_i32_0 : i32, i32
  }
  func.func @transform_5(%arg0: i32, %arg1: i32) -> (i32, i32) {
    %c0_i32 = arith.constant 0 : i32
    %c0_i32_0 = arith.constant 0 : i32
    return %arg0, %c0_i32 : i32, i32
  }
  func.func @transform_6(%arg0: i32, %arg1: i32) -> (i32, i32) {
    %c0_i32 = arith.constant 0 : i32
    return %arg0, %arg1 : i32, i32
  }
}

</mosaic_0001>

<llo_original>
// kernel: tpu_custom_call.1
$region0: #{tpu_custom_call.1}
  #allocation0 [shape = 'u32[]', space=smem, size = 0x4, offset = 0x4, fixed_abs, tag = 'smem constant byte address 0x4 - core index']
  #allocation1 [shape = 'u32[144,128]{1,0:T(1,128)}', space=vmem, size = 0x12000, scoped, tag = 'internal scratch']
  #allocation2 [shape = 'f32[128,256]{1,0:T(8,128)}', space=vmem, size = 0x20000, scoped, tag = 'scratch operand']
  %s0 = inlined_call_operand.hbm [shape: bf16[256,256], index: 0, kind: input, shape index: {}]
  %s1 = inlined_call_operand.hbm [shape: bf16[256,2304], index: 1, kind: input, shape index: {}]
  %s2 = inlined_call_operand.hbm [shape: f32[1,2304], index: 2, kind: input, shape index: {}]
  %s3 = inlined_call_operand.hbm [shape: bf16[2304,256], index: 3, kind: input, shape index: {}]
  %s4 = inlined_call_operand.hbm [shape: f32[1,256], index: 4, kind: input, shape index: {}]
  %s5 = inlined_call_operand.hbm [shape: f32[256,256], index: 5, kind: output, shape index: {0}]
  %s6 = inlined_call_operand.hbm [shape: f32[256,2304], index: 6, kind: output, shape index: {1}]
  %7 = xla_tuple %s5, %s6
  %s8 = sld [smem:[#allocation0]]
  $region89: #{tpu_custom_call.1} parent=0
    _
  %s10 = ssub.s32 1, %s8
  %s11 = scalar_select 0, %s10, %s8
  $region1: #{tpu_custom_call.1} parent=0
    #allocation3 [shape = 'u8[131072]{0}', space=vmem, size = 0x20000, scoped, tag = 'input window, operand 0']
    #allocation4 [shape = 's32[2]{0}', space=sflag, size = 0x8, scoped, tag = 'scoped memory for tpu_custom_call.1']
    #allocation5 [shape = 's32[2]{0}', space=sflag, size = 0x8, scoped, tag = 'scoped memory for tpu_custom_call.1']
    #allocation6 [shape = 'u8[393216]{0}', space=vmem, size = 0x60000, scoped, tag = 'input window, operand 1']
    #allocation7 [shape = 's32[2]{0}', space=sflag, size = 0x8, scoped, tag = 'scoped memory for tpu_custom_call.1']
    #allocation8 [shape = 'u8[3072]{0}', space=vmem, size = 0xc00, scoped, tag = 'input window, operand 2']
    #allocation9 [shape = 'u8[393216]{0}', space=vmem, size = 0x60000, scoped, tag = 'input window, operand 3']
    #allocation10 [shape = 's32[2]{0}', space=sflag, size = 0x8, scoped, tag = 'scoped memory for tpu_custom_call.1']
    #allocation11 [shape = 'u8[1024]{0}', space=vmem, size = 0x400, scoped, tag = 'input window, operand 4, single buffered']
    #allocation12 [shape = 'u8[262144]{0}', space=vmem, size = 0x40000, scoped, tag = 'output window, operand 0']
    #allocation13 [shape = 'u8[393216]{0}', space=vmem, size = 0x60000, scoped, tag = 'output window, operand 1']
    #allocation14 [shape = 's32[2]{0}', space=sflag, size = 0x8, scoped, tag = 'scoped memory for tpu_custom_call.1']
    %12 = vsyncpa [#allocation4], 0
    %s13 = scalar_lea.sflag [#allocation4], 1
    %14 = vsyncpa %s13, 0
    %15 = vsyncpa [#allocation7], 0
    %s16 = scalar_lea.sflag [#allocation7], 1
    %17 = vsyncpa %s16, 0
    %18 = vsyncpa [#allocation10], 0
    %s19 = scalar_lea.sflag [#allocation10], 1
    %20 = vsyncpa %s19, 0
    %21 = vsyncpa [#allocation5], 0
    %s22 = scalar_lea.sflag [#allocation5], 1
    %23 = vsyncpa %s22, 0
    %24 = vsyncpa [#allocation14], 0
    %s25 = scalar_lea.sflag [#allocation14], 1
    %26 = vsyncpa %s25, 0
    loop: start=0, step=1, limit=14
    $region2: #{tpu_custom_call.1} parent=1 // loop_pre_header
      _
    $region3: #{tpu_custom_call.1} parent=1 // loop_header
      %s28 = sphi 0, %s32
      %p29 = scmp.ge.s32.totalorder %s28, 14
      %s35 = sphi 0, %s47
      %s36 = sphi 0, %s43
      %s37 = sphi 0, %s35
      %s38 = sphi 0, %s36
      %s39 = sphi 0, %s37
      %s40 = sphi 0, %s38
      %s50 = sphi 0, %s52
      %s53 = sphi 0, %s50
      %s54 = sphi 0, %s53
      %s70 = sphi 0, %s54
      %s76 = sphi 0, %s78
      %s79 = sphi 0, %s76
      %s80 = sphi 0, %s79
      %s96 = sphi 0, %s80
      %s102 = sphi 0, %s104
      %s105 = sphi 0, %s102
      %s106 = sphi 0, %s105
      %s122 = sphi 0, %s106
      %s128 = sphi 0, %s130
      %s131 = sphi 0, %s128
      %s132 = sphi 0, %s131
      %s148 = sphi 0, %s132
      %s152 = sphi 0, %s152
      %s154 = sphi 0, %s152
      %s155 = sphi 0, %s154
      %s169 = sphi 0, %s155
      %s175 = sphi 0, %s177
      %s178 = sphi 0, %s175
      %s179 = sphi 0, %s178
      %s195 = sphi 0, %s179
      %s203 = sphi 0, %s205
      %s206 = sphi 0, %s203
      %s207 = sphi 0, %s206
      %s223 = sphi 0, %s207
    $region4: #{tpu_custom_call.1} parent=1 // loop_header_branch
      %31 = sbr.rel (%p29) target = $region8
    $region5: #{tpu_custom_call.1} parent=1 // loop_body
      %s33 = ssub.s32 %s28, 1
      %s34 = ssub.s32 %s28, 2
      %s41 = sadd.s32 1, %s36
      %p42 = scmp.ge.s32.totalorder %s41, 6
      %s43 = scalar_select %p42, 0, %s41
      %s44 = sadd.s32 1, %s35
      %s45 = scalar_select %p42, %s44, %s35
      %p46 = scmp.ge.s32.totalorder %s45, 2
      %s47 = scalar_select %p46, 0, %s45
      %s48 = ssub.s32 %s35, %s47
      %p49 = scmp.eq.s32.totalorder %s48, 0
      %s51 = sadd.s32 %s50, 1
      %s52 = scalar_select %p49, %s50, %s51
      %p55 = pneg %p49
      %p56 = scmp.eq.s32.totalorder %s28, 11
      %p57 = por %p55, %p56
      %p58 = scmp.ne.s32.totalorder %s50, %s53
      %p59 = scmp.eq.s32.totalorder %s28, 0
      %p60 = por %p58, %p59
      %p61 = scmp.ne.s32.totalorder %s50, %s53
      %p62 = scmp.eq.s32.totalorder %s33, 11
      %p63 = por %p61, %p62
      %p64 = scmp.ne.s32.totalorder %s53, %s54
      %p65 = scmp.eq.s32.totalorder %s33, 0
      %p66 = por %p64, %p65
      %p67 = scmp.ne.s32.totalorder %s53, %s54
      %p68 = scmp.eq.s32.totalorder %s34, 11
      %p69 = por %p67, %p68
      %p71 = scmp.ne.s32.totalorder %s54, %s70
      %p72 = scmp.eq.s32.totalorder %s34, 0
      %p73 = por %p71, %p72
      %s74 = ssub.s32 %s36, %s43
      %p75 = scmp.eq.s32.totalorder %s74, 0
      %s77 = sadd.s32 %s76, 1
      %s78 = scalar_select %p75, %s76, %s77
      %p81 = pneg %p75
      %p82 = scmp.eq.s32.totalorder %s28, 11
      %p83 = por %p81, %p82
      %p84 = scmp.ne.s32.totalorder %s76, %s79
      %p85 = scmp.eq.s32.totalorder %s28, 0
      %p86 = por %p84, %p85
      %p87 = scmp.ne.s32.totalorder %s76, %s79
      %p88 = scmp.eq.s32.totalorder %s33, 11
      %p89 = por %p87, %p88
      %p90 = scmp.ne.s32.totalorder %s79, %s80
      %p91 = scmp.eq.s32.totalorder %s33, 0
      %p92 = por %p90, %p91
      %p93 = scmp.ne.s32.totalorder %s79, %s80
      %p94 = scmp.eq.s32.totalorder %s34, 11
      %p95 = por %p93, %p94
      %p97 = scmp.ne.s32.totalorder %s80, %s96
      %p98 = scmp.eq.s32.totalorder %s34, 0
      %p99 = por %p97, %p98
      %s100 = ssub.s32 %s36, %s43
      %p101 = scmp.eq.s32.totalorder %s100, 0
      %s103 = sadd.s32 %s102, 1
      %s104 = scalar_select %p101, %s102, %s103
      %p107 = pneg %p101
      %p108 = scmp.eq.s32.totalorder %s28, 11
      %p109 = por %p107, %p108
      %p110 = scmp.ne.s32.totalorder %s102, %s105
      %p111 = scmp.eq.s32.totalorder %s28, 0
      %p112 = por %p110, %p111
      %p113 = scmp.ne.s32.totalorder %s102, %s105
      %p114 = scmp.eq.s32.totalorder %s33, 11
      %p115 = por %p113, %p114
      %p116 = scmp.ne.s32.totalorder %s105, %s106
      %p117 = scmp.eq.s32.totalorder %s33, 0
      %p118 = por %p116, %p117
      %p119 = scmp.ne.s32.totalorder %s105, %s106
      %p120 = scmp.eq.s32.totalorder %s34, 11
      %p121 = por %p119, %p120
      %p123 = scmp.ne.s32.totalorder %s106, %s122
      %p124 = scmp.eq.s32.totalorder %s34, 0
      %p125 = por %p123, %p124
      %s126 = ssub.s32 %s36, %s43
      %p127 = scmp.eq.s32.totalorder %s126, 0
      %s129 = sadd.s32 %s128, 1
      %s130 = scalar_select %p127, %s128, %s129
      %p133 = pneg %p127
      %p134 = scmp.eq.s32.totalorder %s28, 11
      %p135 = por %p133, %p134
      %p136 = scmp.ne.s32.totalorder %s128, %s131
      %p137 = scmp.eq.s32.totalorder %s28, 0
      %p138 = por %p136, %p137
      %p139 = scmp.ne.s32.totalorder %s128, %s131
      %p140 = scmp.eq.s32.totalorder %s33, 11
      %p141 = por %p139, %p140
      %p142 = scmp.ne.s32.totalorder %s131, %s132
      %p143 = scmp.eq.s32.totalorder %s33, 0
      %p144 = por %p142, %p143
      %p145 = scmp.ne.s32.totalorder %s131, %s132
      %p146 = scmp.eq.s32.totalorder %s34, 11
      %p147 = por %p145, %p146
      %p149 = scmp.ne.s32.totalorder %s132, %s148
      %p150 = scmp.eq.s32.totalorder %s34, 0
      %p151 = por %p149, %p150
      %s153 = sadd.s32 %s152, 1
      %p156 = scmp.eq.s32.totalorder %s28, 11
      %p157 = scmp.ne.s32.totalorder %s152, %s154
      %p158 = scmp.eq.s32.totalorder %s28, 0
      %p159 = por %p157, %p158
      %p160 = scmp.ne.s32.totalorder %s152, %s154
      %p161 = scmp.eq.s32.totalorder %s33, 11
      %p162 = por %p160, %p161
      %p163 = scmp.ne.s32.totalorder %s154, %s155
      %p164 = scmp.eq.s32.totalorder %s33, 0
      %p165 = por %p163, %p164
      %p166 = scmp.ne.s32.totalorder %s154, %s155
      %p167 = scmp.eq.s32.totalorder %s34, 11
      %p168 = por %p166, %p167
      %p170 = scmp.ne.s32.totalorder %s155, %s169
      %p171 = scmp.eq.s32.totalorder %s34, 0
      %p172 = por %p170, %p171
      %s173 = ssub.s32 %s35, %s47
      %p174 = scmp.eq.s32.totalorder %s173, 0
      %s176 = sadd.s32 %s175, 1
      %s177 = scalar_select %p174, %s175, %s176
      %p180 = pneg %p174
      %p181 = scmp.eq.s32.totalorder %s28, 11
      %p182 = por %p180, %p181
      %p183 = scmp.ne.s32.totalorder %s175, %s178
      %p184 = scmp.eq.s32.totalorder %s28, 0
      %p185 = por %p183, %p184
      %p186 = scmp.ne.s32.totalorder %s175, %s178
      %p187 = scmp.eq.s32.totalorder %s33, 11
      %p188 = por %p186, %p187
      %p189 = scmp.ne.s32.totalorder %s178, %s179
      %p190 = scmp.eq.s32.totalorder %s33, 0
      %p191 = por %p189, %p190
      %p192 = scmp.ne.s32.totalorder %s178, %s179
      %p193 = scmp.eq.s32.totalorder %s34, 11
      %p194 = por %p192, %p193
      %p196 = scmp.ne.s32.totalorder %s179, %s195
      %p197 = scmp.eq.s32.totalorder %s34, 0
      %p198 = por %p196, %p197
      %s199 = ssub.s32 %s35, %s47
      %s200 = ssub.s32 %s36, %s43
      %s201 = sor.u32 %s199, %s200
      %p202 = scmp.eq.s32.totalorder %s201, 0
      %s204 = sadd.s32 %s203, 1
      %s205 = scalar_select %p202, %s203, %s204
      %p208 = pneg %p202
      %p209 = scmp.eq.s32.totalorder %s28, 11
      %p210 = por %p208, %p209
      %p211 = scmp.ne.s32.totalorder %s203, %s206
      %p212 = scmp.eq.s32.totalorder %s28, 0
      %p213 = por %p211, %p212
      %p214 = scmp.ne.s32.totalorder %s203, %s206
      %p215 = scmp.eq.s32.totalorder %s33, 11
      %p216 = por %p214, %p215
      %p217 = scmp.ne.s32.totalorder %s206, %s207
      %p218 = scmp.eq.s32.totalorder %s33, 0
      %p219 = por %p217, %p218
      %p220 = scmp.ne.s32.totalorder %s206, %s207
      %p221 = scmp.eq.s32.totalorder %s34, 11
      %p222 = por %p220, %p221
      %p224 = scmp.ne.s32.totalorder %s207, %s223
      %p225 = scmp.eq.s32.totalorder %s34, 0
      %p226 = por %p224, %p225
      %p227 = scmp.le.s32.totalorder 1, %s28
      %p228 = scmp.lt.s32.totalorder %s28, 13
      %p229 = pnand %p227, %p228
      %p230 = pneg %p229
      // Predicated region
      $region9: #{tpu_custom_call.1} parent=5 // pred_check
        _
      $region10: #{tpu_custom_call.1} parent=5 // pred_check_branch
        %232 = sbr.rel (%p229) target = $region12
      $region11: #{tpu_custom_call.1} parent=5 // pred_region
        %s233 = ssub.s32 %s28, 1
        // Predicated region
        $region13: #{tpu_custom_call.1} parent=11 // pred_check
          %p234 = pneg %p165
        $region14: #{tpu_custom_call.1} parent=11 // pred_check_branch
          %236 = sbr.rel (%p234) target = $region16
        $region15: #{tpu_custom_call.1} parent=11 // pred_region
          %s238 = ssub.s32 32, 32
          %239 = vsyncadd [#allocation10], %s238
          %s241 = sshll.u32 [#allocation11], 4
          %s242 = int_to_ptr.vmem [resolvable:$true] %s241
          %244 = dma.hbm_to_vmem [thread:$0]  %s4, 32, %s242, [#allocation10]
        $region16: #{tpu_custom_call.1} parent=11 // pred_fallthru
          _
      $region12: #{tpu_custom_call.1} parent=5 // pred_fallthru
        _
      %p245 = scmp.lt.s32.totalorder %s28, 12
      // Predicated region
      $region17: #{tpu_custom_call.1} parent=5 // pred_check
        %p246 = pneg %p245
      $region18: #{tpu_custom_call.1} parent=5 // pred_check_branch
        %248 = sbr.rel (%p246) target = $region20
      $region19: #{tpu_custom_call.1} parent=5 // pred_region
        // Predicated region
        $region21: #{tpu_custom_call.1} parent=19 // pred_check
          %p249 = pneg %p60
        $region22: #{tpu_custom_call.1} parent=19 // pred_check_branch
          %251 = sbr.rel (%p249) target = $region24
        $region23: #{tpu_custom_call.1} parent=19 // pred_region
          %s252 = sand.u32 %s50, 1
          %s253 = scalar_lea.sflag [#allocation4], %s252
          %s254 = sand.u32 %s50, 1
          %s255 = smul.addr %s254, 128
          %s256 = scalar_lea.vmem [#allocation3], %s255
          %s257 = smul.u32 16, %s35
          %s259 = ssub.s32 2048, 2048
          %260 = vsyncadd %s253, %s259
          %s261 = smul.addr %s257, 2
          %s262 = smul.addr %s261, 64
          %s263 = scalar_lea.hbm %s0, %s262
          %s264 = sshll.u32 %s256, 4
          %s265 = int_to_ptr.vmem [resolvable:$true] %s264
          %270 = dma.hbm_to_vmem [thread:$0]  %s263, 2048, %s265, %s253, 128, 128, 8
        $region24: #{tpu_custom_call.1} parent=19 // pred_fallthru
          _
        // Predicated region
        $region25: #{tpu_custom_call.1} parent=19 // pred_check
          %p271 = pneg %p86
        $region26: #{tpu_custom_call.1} parent=19 // pred_check_branch
          %273 = sbr.rel (%p271) target = $region28
        $region27: #{tpu_custom_call.1} parent=19 // pred_region
          %s274 = sand.u32 %s28, 1
          %s275 = scalar_lea.sflag [#allocation7], %s274
          %s276 = sand.u32 %s76, 1
          %s277 = smul.addr %s276, 384
          %s278 = scalar_lea.vmem [#allocation6], %s277
          %s279 = smul.u32 3, %s36
          %s281 = ssub.s32 6144, 6144
          %282 = vsyncadd %s275, %s281
          %s283 = smul.addr %s279, 64
          %s284 = scalar_lea.hbm %s1, %s283
          %s285 = sshll.u32 %s278, 4
          %s286 = int_to_ptr.vmem [resolvable:$true] %s285
          %291 = dma.hbm_to_vmem [thread:$0]  %s284, 6144, %s286, %s275, 1152, 192, 12
        $region28: #{tpu_custom_call.1} parent=19 // pred_fallthru
          _
        // Predicated region
        $region29: #{tpu_custom_call.1} parent=19 // pred_check
          %p292 = pneg %p112
        $region30: #{tpu_custom_call.1} parent=19 // pred_check_branch
          %294 = sbr.rel (%p292) target = $region32
        $region31: #{tpu_custom_call.1} parent=19 // pred_region
          %s295 = sand.u32 %s28, 1
          %s296 = scalar_lea.sflag [#allocation7], %s295
          %s297 = sand.u32 %s102, 1
          %s298 = smul.addr %s297, 3
          %s299 = scalar_lea.vmem [#allocation8], %s298
          %s300 = smul.u32 3, %s36
          %s302 = ssub.s32 48, 48
          %303 = vsyncadd %s296, %s302
          %s304 = smul.addr %s300, 16
          %s305 = scalar_lea.hbm %s2, %s304
          %s307 = sshll.u32 %s299, 4
          %s308 = int_to_ptr.vmem [resolvable:$true] %s307
          %310 = dma.hbm_to_vmem [thread:$0]  %s305, 48, %s308, %s296
        $region32: #{tpu_custom_call.1} parent=19 // pred_fallthru
          _
        // Predicated region
        $region33: #{tpu_custom_call.1} parent=19 // pred_check
          %p311 = pneg %p138
        $region34: #{tpu_custom_call.1} parent=19 // pred_check_branch
          %313 = sbr.rel (%p311) target = $region36
        $region35: #{tpu_custom_call.1} parent=19 // pred_region
          %s314 = sand.u32 %s28, 1
          %s315 = scalar_lea.sflag [#allocation10], %s314
          %s316 = sand.u32 %s128, 1
          %s317 = smul.addr %s316, 384
          %s318 = scalar_lea.vmem [#allocation9], %s317
          %s319 = smul.u32 48, %s36
          %s321 = ssub.s32 6144, 6144
          %322 = vsyncadd %s315, %s321
          %s323 = smul.addr %s319, 2
          %s324 = smul.addr %s323, 64
          %s325 = scalar_lea.hbm %s3, %s324
          %s326 = sshll.u32 %s318, 4
          %s327 = int_to_ptr.vmem [resolvable:$true] %s326
          %332 = dma.hbm_to_vmem [thread:$0]  %s325, 6144, %s327, %s315, 128, 128, 8
        $region36: #{tpu_custom_call.1} parent=19 // pred_fallthru
          _
      $region20: #{tpu_custom_call.1} parent=5 // pred_fallthru
        _
      %p333 = scmp.le.s32.totalorder 1, %s28
      %p334 = scmp.lt.s32.totalorder %s28, 13
      %p335 = pnand %p333, %p334
      %p336 = pneg %p335
      // Predicated region
      $region37: #{tpu_custom_call.1} parent=5 // pred_check
        _
      $region38: #{tpu_custom_call.1} parent=5 // pred_check_branch
        %338 = sbr.rel (%p335) target = $region40
      $region39: #{tpu_custom_call.1} parent=5 // pred_region
        %s339 = ssub.s32 %s28, 1
        %s340 = sand.u32 %s53, 1
        %s341 = scalar_lea.sflag [#allocation4], %s340
        %s342 = sand.u32 %s53, 1
        %s343 = smul.addr %s342, 128
        %s344 = scalar_lea.vmem [#allocation3], %s343
        // Predicated region
        $region41: #{tpu_custom_call.1} parent=39 // pred_check
          %p345 = pneg %p66
        $region42: #{tpu_custom_call.1} parent=39 // pred_check_branch
          %347 = sbr.rel (%p345) target = $region44
        $region43: #{tpu_custom_call.1} parent=39 // pred_region
          %348 = dma.done %s341, 2048
        $region44: #{tpu_custom_call.1} parent=39 // pred_fallthru
          _
        %s349 = sand.u32 %s33, 1
        %s350 = scalar_lea.sflag [#allocation7], %s349
        %s351 = sand.u32 %s79, 1
        %s352 = smul.addr %s351, 384
        %s353 = scalar_lea.vmem [#allocation6], %s352
        // Predicated region
        $region45: #{tpu_custom_call.1} parent=39 // pred_check
          %p354 = pneg %p92
        $region46: #{tpu_custom_call.1} parent=39 // pred_check_branch
          %356 = sbr.rel (%p354) target = $region48
        $region47: #{tpu_custom_call.1} parent=39 // pred_region
          %357 = dma.done %s350, 6144
        $region48: #{tpu_custom_call.1} parent=39 // pred_fallthru
          _
        %s358 = sand.u32 %s33, 1
        %s359 = scalar_lea.sflag [#allocation7], %s358
        %s360 = sand.u32 %s105, 1
        %s361 = smul.addr %s360, 3
        %s362 = scalar_lea.vmem [#allocation8], %s361
        // Predicated region
        $region49: #{tpu_custom_call.1} parent=39 // pred_check
          %p363 = pneg %p118
        $region50: #{tpu_custom_call.1} parent=39 // pred_check_branch
          %365 = sbr.rel (%p363) target = $region52
        $region51: #{tpu_custom_call.1} parent=39 // pred_region
          %366 = dma.done %s359, 48
        $region52: #{tpu_custom_call.1} parent=39 // pred_fallthru
          _
        %s367 = sand.u32 %s33, 1
        %s368 = scalar_lea.sflag [#allocation10], %s367
        %s369 = sand.u32 %s131, 1
        %s370 = smul.addr %s369, 384
        %s371 = scalar_lea.vmem [#allocation9], %s370
        // Predicated region
        $region53: #{tpu_custom_call.1} parent=39 // pred_check
          %p372 = pneg %p144
        $region54: #{tpu_custom_call.1} parent=39 // pred_check_branch
          %374 = sbr.rel (%p372) target = $region56
        $region55: #{tpu_custom_call.1} parent=39 // pred_region
          %375 = dma.done %s368, 6144
        $region56: #{tpu_custom_call.1} parent=39 // pred_fallthru
          _
        // Predicated region
        $region57: #{tpu_custom_call.1} parent=39 // pred_check
          %p376 = pneg %p165
        $region58: #{tpu_custom_call.1} parent=39 // pred_check_branch
          %378 = sbr.rel (%p376) target = $region60
        $region59: #{tpu_custom_call.1} parent=39 // pred_region
          %379 = dma.done [#allocation10], 32
        $region60: #{tpu_custom_call.1} parent=39 // pred_fallthru
          _
        %s380 = sand.u32 %s53, 1
        %s381 = scalar_lea.sflag [#allocation4], %s380
        %s382 = sand.u32 %s53, 1
        %s383 = smul.addr %s382, 128
        %s384 = scalar_lea.vmem [#allocation3], %s383
        %p385 = pneg %p66
        %p386 = pneg %p63
        %s387 = sand.u32 %s33, 1
        %s388 = scalar_lea.sflag [#allocation7], %s387
        %s389 = sand.u32 %s79, 1
        %s390 = smul.addr %s389, 384
        %s391 = scalar_lea.vmem [#allocation6], %s390
        %p392 = pneg %p92
        %p393 = pneg %p89
        %s394 = sand.u32 %s33, 1
        %s395 = scalar_lea.sflag [#allocation7], %s394
        %s396 = sand.u32 %s105, 1
        %s397 = smul.addr %s396, 3
        %s398 = scalar_lea.vmem [#allocation8], %s397
        %p399 = pneg %p118
        %p400 = pneg %p115
        %s401 = sand.u32 %s33, 1
        %s402 = scalar_lea.sflag [#allocation10], %s401
        %s403 = sand.u32 %s131, 1
        %s404 = smul.addr %s403, 384
        %s405 = scalar_lea.vmem [#allocation9], %s404
        %p406 = pneg %p144
        %p407 = pneg %p141
        %p408 = pneg %p165
        %p409 = pneg %p162
        %p410 = pneg %p191
        %p411 = pneg %p188
        %s412 = sand.u32 %s178, 1
        %s413 = scalar_lea.sflag [#allocation5], %s412
        %s414 = sand.u32 %s178, 1
        %s415 = smul.addr %s414, 256
        %s416 = scalar_lea.vmem [#allocation12], %s415
        %p417 = pneg %p219
        %p418 = pneg %p216
        %s419 = sand.u32 %s206, 1
        %s420 = scalar_lea.sflag [#allocation14], %s419
        %s421 = sand.u32 %s206, 1
        %s422 = smul.addr %s421, 384
        %s423 = scalar_lea.vmem [#allocation13], %s422
        %s424 = smul.u32 16, %s37
        %s425 = smul.u32 3, %s38
        %s426 = smul.u32 3, %s38
        %s427 = smul.u32 48, %s38
        %s428 = smul.u32 16, %s37
        %s429 = smul.u32 16, %s37
        %s430 = smul.u32 3, %s38
        %p432 = scmp.eq.s32.totalorder %s38, 0
        // Predicated region
        $region61: #{tpu_custom_call.1} parent=39 // pred_check
          %p433 = pneg %p432
        $region62: #{tpu_custom_call.1} parent=39 // pred_check_branch
          %435 = sbr.rel (%p433) target = $region64
        $region63: #{tpu_custom_call.1} parent=39 // pred_region
          %436 = vst [vmem:[#allocation2] sm:$0xff] 0.0
          %437 = vst [vmem:[#allocation2 + $0x8] sm:$0xff] 0.0
          %438 = vst [vmem:[#allocation2 + $0x10] sm:$0xff] 0.0
          %439 = vst [vmem:[#allocation2 + $0x18] sm:$0xff] 0.0
          %440 = vst [vmem:[#allocation2 + $0x20] sm:$0xff] 0.0
          %441 = vst [vmem:[#allocation2 + $0x28] sm:$0xff] 0.0
          %442 = vst [vmem:[#allocation2 + $0x30] sm:$0xff] 0.0
          %443 = vst [vmem:[#allocation2 + $0x38] sm:$0xff] 0.0
          %444 = vst [vmem:[#allocation2 + $0x40] sm:$0xff] 0.0
          %445 = vst [vmem:[#allocation2 + $0x48] sm:$0xff] 0.0
          %446 = vst [vmem:[#allocation2 + $0x50] sm:$0xff] 0.0
          %447 = vst [vmem:[#allocation2 + $0x58] sm:$0xff] 0.0
          %448 = vst [vmem:[#allocation2 + $0x60] sm:$0xff] 0.0
          %449 = vst [vmem:[#allocation2 + $0x68] sm:$0xff] 0.0
          %450 = vst [vmem:[#allocation2 + $0x70] sm:$0xff] 0.0
          %451 = vst [vmem:[#allocation2 + $0x78] sm:$0xff] 0.0
          %452 = vst [vmem:[#allocation2 + $0x80] sm:$0xff] 0.0
          %453 = vst [vmem:[#allocation2 + $0x88] sm:$0xff] 0.0
          %454 = vst [vmem:[#allocation2 + $0x90] sm:$0xff] 0.0
          %455 = vst [vmem:[#allocation2 + $0x98] sm:$0xff] 0.0
          %456 = vst [vmem:[#allocation2 + $0xa0] sm:$0xff] 0.0
          %457 = vst [vmem:[#allocation2 + $0xa8] sm:$0xff] 0.0
          %458 = vst [vmem:[#allocation2 + $0xb0] sm:$0xff] 0.0
          %459 = vst [vmem:[#allocation2 + $0xb8] sm:$0xff] 0.0
          %460 = vst [vmem:[#allocation2 + $0xc0] sm:$0xff] 0.0
          %461 = vst [vmem:[#allocation2 + $0xc8] sm:$0xff] 0.0
          %462 = vst [vmem:[#allocation2 + $0xd0] sm:$0xff] 0.0
          %463 = vst [vmem:[#allocation2 + $0xd8] sm:$0xff] 0.0
          %464 = vst [vmem:[#allocation2 + $0xe0] sm:$0xff] 0.0
          %465 = vst [vmem:[#allocation2 + $0xe8] sm:$0xff] 0.0
          %466 = vst [vmem:[#allocation2 + $0xf0] sm:$0xff] 0.0
          %467 = vst [vmem:[#allocation2 + $0xf8] sm:$0xff] 0.0
        $region64: #{tpu_custom_call.1} parent=39 // pred_fallthru
          _
        %v468 = vld [vmem:[%s344] sm:$0xff]
        %v469 = vld [vmem:[%s344 + $0x8] sm:$0xff]
        %v470 = vld [vmem:[%s344 + $0x10] sm:$0xff]
        %v471 = vld [vmem:[%s344 + $0x18] sm:$0xff]
        %v472 = vld [vmem:[%s344 + $0x20] sm:$0xff]
        %v473 = vld [vmem:[%s344 + $0x28] sm:$0xff]
        %v474 = vld [vmem:[%s344 + $0x30] sm:$0xff]
        %v475 = vld [vmem:[%s344 + $0x38] sm:$0xff]
        %v476 = vld [vmem:[%s344 + $0x40] sm:$0xff]
        %v477 = vld [vmem:[%s344 + $0x48] sm:$0xff]
        %v478 = vld [vmem:[%s344 + $0x50] sm:$0xff]
        %v479 = vld [vmem:[%s344 + $0x58] sm:$0xff]
        %v480 = vld [vmem:[%s344 + $0x60] sm:$0xff]
        %v481 = vld [vmem:[%s344 + $0x68] sm:$0xff]
        %v482 = vld [vmem:[%s344 + $0x70] sm:$0xff]
        %v483 = vld [vmem:[%s344 + $0x78] sm:$0xff]
        %v484 = vld [vmem:[%s353] sm:$0xff]
        %v485 = vld [vmem:[%s353 + $0x8] sm:$0xf]
        %v486 = vld [vmem:[%s353 + $0xc] sm:$0xff]
        %v487 = vld [vmem:[%s353 + $0x14] sm:$0xf]
        %v488 = vld [vmem:[%s353 + $0x18] sm:$0xff]
        %v489 = vld [vmem:[%s353 + $0x20] sm:$0xf]
        %v490 = vld [vmem:[%s353 + $0x24] sm:$0xff]
        %v491 = vld [vmem:[%s353 + $0x2c] sm:$0xf]
        %v492 = vld [vmem:[%s353 + $0x30] sm:$0xff]
        %v493 = vld [vmem:[%s353 + $0x38] sm:$0xf]
        %v494 = vld [vmem:[%s353 + $0x3c] sm:$0xff]
        %v495 = vld [vmem:[%s353 + $0x44] sm:$0xf]
        %v496 = vld [vmem:[%s353 + $0x48] sm:$0xff]
        %v497 = vld [vmem:[%s353 + $0x50] sm:$0xf]
        %v498 = vld [vmem:[%s353 + $0x54] sm:$0xff]
        %v499 = vld [vmem:[%s353 + $0x5c] sm:$0xf]
        %v500 = vld [vmem:[%s353 + $0x60] sm:$0xff]
        %v501 = vld [vmem:[%s353 + $0x68] sm:$0xf]
        %v502 = vld [vmem:[%s353 + $0x6c] sm:$0xff]
        %v503 = vld [vmem:[%s353 + $0x74] sm:$0xf]
        %v504 = vld [vmem:[%s353 + $0x78] sm:$0xff]
        %v505 = vld [vmem:[%s353 + $0x80] sm:$0xf]
        %v506 = vld [vmem:[%s353 + $0x84] sm:$0xff]
        %v507 = vld [vmem:[%s353 + $0x8c] sm:$0xf]
        %v508 = vld [vmem:[%s353 + $0x90] sm:$0xff]
        %v509 = vld [vmem:[%s353 + $0x98] sm:$0xf]
        %v510 = vld [vmem:[%s353 + $0x9c] sm:$0xff]
        %v511 = vld [vmem:[%s353 + $0xa4] sm:$0xf]
        %v512 = vld [vmem:[%s353 + $0xa8] sm:$0xff]
        %v513 = vld [vmem:[%s353 + $0xb0] sm:$0xf]
        %v514 = vld [vmem:[%s353 + $0xb4] sm:$0xff]
        %v515 = vld [vmem:[%s353 + $0xbc] sm:$0xf]
        %v516 = vld [vmem:[%s353 + $0xc0] sm:$0xff]
        %v517 = vld [vmem:[%s353 + $0xc8] sm:$0xf]
        %v518 = vld [vmem:[%s353 + $0xcc] sm:$0xff]
        %v519 = vld [vmem:[%s353 + $0xd4] sm:$0xf]
        %v520 = vld [vmem:[%s353 + $0xd8] sm:$0xff]
        %v521 = vld [vmem:[%s353 + $0xe0] sm:$0xf]
        %v522 = vld [vmem:[%s353 + $0xe4] sm:$0xff]
        %v523 = vld [vmem:[%s353 + $0xec] sm:$0xf]
        %v524 = vld [vmem:[%s353 + $0xf0] sm:$0xff]
        %v525 = vld [vmem:[%s353 + $0xf8] sm:$0xf]
        %v526 = vld [vmem:[%s353 + $0xfc] sm:$0xff]
        %v527 = vld [vmem:[%s353 + $0x104] sm:$0xf]
        %v528 = vld [vmem:[%s353 + $0x108] sm:$0xff]
        %v529 = vld [vmem:[%s353 + $0x110] sm:$0xf]
        %v530 = vld [vmem:[%s353 + $0x114] sm:$0xff]
        %v531 = vld [vmem:[%s353 + $0x11c] sm:$0xf]
        %v532 = vld [vmem:[%s353 + $0x120] sm:$0xff]
        %v533 = vld [vmem:[%s353 + $0x128] sm:$0xf]
        %v534 = vld [vmem:[%s353 + $0x12c] sm:$0xff]
        %v535 = vld [vmem:[%s353 + $0x134] sm:$0xf]
        %v536 = vld [vmem:[%s353 + $0x138] sm:$0xff]
        %v537 = vld [vmem:[%s353 + $0x140] sm:$0xf]
        %v538 = vld [vmem:[%s353 + $0x144] sm:$0xff]
        %v539 = vld [vmem:[%s353 + $0x14c] sm:$0xf]
        %v540 = vld [vmem:[%s353 + $0x150] sm:$0xff]
        %v541 = vld [vmem:[%s353 + $0x158] sm:$0xf]
        %v542 = vld [vmem:[%s353 + $0x15c] sm:$0xff]
        %v543 = vld [vmem:[%s353 + $0x164] sm:$0xf]
        %v544 = vld [vmem:[%s353 + $0x168] sm:$0xff]
        %v545 = vld [vmem:[%s353 + $0x170] sm:$0xf]
        %v546 = vld [vmem:[%s353 + $0x174] sm:$0xff]
        %v547 = vld [vmem:[%s353 + $0x17c] sm:$0xf]
        %v548 = vld [vmem:[%s362] sm:$0x7]
        %v550 = vlaneseq
        %v551 = vshrl.u32 %v550, 7
        %v552 = vsub.s32 0, %v551
        %v553 = vrot.slane %v548, %v552
        %v554 = vlaneseq
        %v555 = vshrl.u32 %v554, 7
        %v556 = vsub.s32 1, %v555
        %v557 = vrot.slane %v548, %v556
        %v558 = vlaneseq
        %v559 = vshrl.u32 %v558, 7
        %v560 = vsub.s32 2, %v559
        %v561 = vrot.slane %v548, %v560
        %v581 = vunpack.c.l.b16 %v468
        %v582 = vunpack.c.h.b16 %v468
        %v583 = vunpack.c.l.b16 %v469
        %v584 = vunpack.c.h.b16 %v469
        %v585 = vunpack.c.l.b16 %v470
        %v586 = vunpack.c.h.b16 %v470
        %v587 = vunpack.c.l.b16 %v471
        %v588 = vunpack.c.h.b16 %v471
        %v589 = vunpack.c.l.b16 %v472
        %v590 = vunpack.c.h.b16 %v472
        %v591 = vunpack.c.l.b16 %v473
        %v592 = vunpack.c.h.b16 %v473
        %v593 = vunpack.c.l.b16 %v474
        %v594 = vunpack.c.h.b16 %v474
        %v595 = vunpack.c.l.b16 %v475
        %v596 = vunpack.c.h.b16 %v475
        %v597 = vunpack.c.l.b16 %v476
        %v598 = vunpack.c.h.b16 %v476
        %v599 = vunpack.c.l.b16 %v477
        %v600 = vunpack.c.h.b16 %v477
        %v601 = vunpack.c.l.b16 %v478
        %v602 = vunpack.c.h.b16 %v478
        %v603 = vunpack.c.l.b16 %v479
        %v604 = vunpack.c.h.b16 %v479
        %v605 = vunpack.c.l.b16 %v480
        %v606 = vunpack.c.h.b16 %v480
        %v607 = vunpack.c.l.b16 %v481
        %v608 = vunpack.c.h.b16 %v481
        %v609 = vunpack.c.l.b16 %v482
        %v610 = vunpack.c.h.b16 %v482
        %v611 = vunpack.c.l.b16 %v483
        %v612 = vunpack.c.h.b16 %v483
        %v613 = vpack.c.b16 %v583, %v581
        %v614 = vpack.c.b16 %v584, %v582
        %v615 = vpack.c.b16 %v587, %v585
        %v616 = vpack.c.b16 %v588, %v586
        %v617 = vpack.c.b16 %v591, %v589
        %v618 = vpack.c.b16 %v592, %v590
        %v619 = vpack.c.b16 %v595, %v593
        %v620 = vpack.c.b16 %v596, %v594
        %v621 = vpack.c.b16 %v599, %v597
        %v622 = vpack.c.b16 %v600, %v598
        %v623 = vpack.c.b16 %v603, %v601
        %v624 = vpack.c.b16 %v604, %v602
        %v625 = vpack.c.b16 %v607, %v605
        %v626 = vpack.c.b16 %v608, %v606
        %v627 = vpack.c.b16 %v611, %v609
        %v628 = vpack.c.b16 %v612, %v610
        %v709 = vunpack.c.l.b16 %v484
        %v710 = vunpack.c.h.b16 %v484
        %v711 = vunpack.c.l.b16 %v485
        %v712 = vunpack.c.l.b16 %v486
        %v713 = vunpack.c.h.b16 %v486
        %v714 = vunpack.c.l.b16 %v487
        %v715 = vunpack.c.l.b16 %v488
        %v716 = vunpack.c.h.b16 %v488
        %v717 = vunpack.c.l.b16 %v489
        %v718 = vunpack.c.l.b16 %v490
        %v719 = vunpack.c.h.b16 %v490
        %v720 = vunpack.c.l.b16 %v491
        %v721 = vunpack.c.l.b16 %v492
        %v722 = vunpack.c.h.b16 %v492
        %v723 = vunpack.c.l.b16 %v493
        %v724 = vunpack.c.l.b16 %v494
        %v725 = vunpack.c.h.b16 %v494
        %v726 = vunpack.c.l.b16 %v495
        %v727 = vunpack.c.l.b16 %v496
        %v728 = vunpack.c.h.b16 %v496
        %v729 = vunpack.c.l.b16 %v497
        %v730 = vunpack.c.l.b16 %v498
        %v731 = vunpack.c.h.b16 %v498
        %v732 = vunpack.c.l.b16 %v499
        %v733 = vunpack.c.l.b16 %v500
        %v734 = vunpack.c.h.b16 %v500
        %v735 = vunpack.c.l.b16 %v501
        %v736 = vunpack.c.l.b16 %v502
        %v737 = vunpack.c.h.b16 %v502
        %v738 = vunpack.c.l.b16 %v503
        %v739 = vunpack.c.l.b16 %v504
        %v740 = vunpack.c.h.b16 %v504
        %v741 = vunpack.c.l.b16 %v505
        %v742 = vunpack.c.l.b16 %v506
        %v743 = vunpack.c.h.b16 %v506
        %v744 = vunpack.c.l.b16 %v507
        %v745 = vunpack.c.l.b16 %v508
        %v746 = vunpack.c.h.b16 %v508
        %v747 = vunpack.c.l.b16 %v509
        %v748 = vunpack.c.l.b16 %v510
        %v749 = vunpack.c.h.b16 %v510
        %v750 = vunpack.c.l.b16 %v511
        %v751 = vunpack.c.l.b16 %v512
        %v752 = vunpack.c.h.b16 %v512
        %v753 = vunpack.c.l.b16 %v513
        %v754 = vunpack.c.l.b16 %v514
        %v755 = vunpack.c.h.b16 %v514
        %v756 = vunpack.c.l.b16 %v515
        %v757 = vunpack.c.l.b16 %v516
        %v758 = vunpack.c.h.b16 %v516
        %v759 = vunpack.c.l.b16 %v517
        %v760 = vunpack.c.l.b16 %v518
        %v761 = vunpack.c.h.b16 %v518
        %v762 = vunpack.c.l.b16 %v519
        %v763 = vunpack.c.l.b16 %v520
        %v764 = vunpack.c.h.b16 %v520
        %v765 = vunpack.c.l.b16 %v521
        %v766 = vunpack.c.l.b16 %v522
        %v767 = vunpack.c.h.b16 %v522
        %v768 = vunpack.c.l.b16 %v523
        %v769 = vunpack.c.l.b16 %v524
        %v770 = vunpack.c.h.b16 %v524
        %v771 = vunpack.c.l.b16 %v525
        %v772 = vunpack.c.l.b16 %v526
        %v773 = vunpack.c.h.b16 %v526
        %v774 = vunpack.c.l.b16 %v527
        %v775 = vunpack.c.l.b16 %v528
        %v776 = vunpack.c.h.b16 %v528
        %v777 = vunpack.c.l.b16 %v529
        %v778 = vunpack.c.l.b16 %v530
        %v779 = vunpack.c.h.b16 %v530
        %v780 = vunpack.c.l.b16 %v531
        %v781 = vunpack.c.l.b16 %v532
        %v782 = vunpack.c.h.b16 %v532
        %v783 = vunpack.c.l.b16 %v533
        %v784 = vunpack.c.l.b16 %v534
        %v785 = vunpack.c.h.b16 %v534
        %v786 = vunpack.c.l.b16 %v535
        %v787 = vunpack.c.l.b16 %v536
        %v788 = vunpack.c.h.b16 %v536
        %v789 = vunpack.c.l.b16 %v537
        %v790 = vunpack.c.l.b16 %v538
        %v791 = vunpack.c.h.b16 %v538
        %v792 = vunpack.c.l.b16 %v539
        %v793 = vunpack.c.l.b16 %v540
        %v794 = vunpack.c.h.b16 %v540
        %v795 = vunpack.c.l.b16 %v541
        %v796 = vunpack.c.l.b16 %v542
        %v797 = vunpack.c.h.b16 %v542
        %v798 = vunpack.c.l.b16 %v543
        %v799 = vunpack.c.l.b16 %v544
        %v800 = vunpack.c.h.b16 %v544
        %v801 = vunpack.c.l.b16 %v545
        %v802 = vunpack.c.l.b16 %v546
        %v803 = vunpack.c.h.b16 %v546
        %v804 = vunpack.c.l.b16 %v547
        %v805 = vpack.c.b16 %v712, %v709
        %v806 = vpack.c.b16 %v713, %v710
        %v807 = vpack.c.b16 %v714, %v711
        %v808 = vpack.c.b16 %v718, %v715
        %v809 = vpack.c.b16 %v719, %v716
        %v810 = vpack.c.b16 %v720, %v717
        %v811 = vpack.c.b16 %v724, %v721
        %v812 = vpack.c.b16 %v725, %v722
        %v813 = vpack.c.b16 %v726, %v723
        %v814 = vpack.c.b16 %v730, %v727
        %v815 = vpack.c.b16 %v731, %v728
        %v816 = vpack.c.b16 %v732, %v729
        %v817 = vpack.c.b16 %v736, %v733
        %v818 = vpack.c.b16 %v737, %v734
        %v819 = vpack.c.b16 %v738, %v735
        %v820 = vpack.c.b16 %v742, %v739
        %v821 = vpack.c.b16 %v743, %v740
        %v822 = vpack.c.b16 %v744, %v741
        %v823 = vpack.c.b16 %v748, %v745
        %v824 = vpack.c.b16 %v749, %v746
        %v825 = vpack.c.b16 %v750, %v747
        %v826 = vpack.c.b16 %v754, %v751
        %v827 = vpack.c.b16 %v755, %v752
        %v828 = vpack.c.b16 %v756, %v753
        %v829 = vpack.c.b16 %v760, %v757
        %v830 = vpack.c.b16 %v761, %v758
        %v831 = vpack.c.b16 %v762, %v759
        %v832 = vpack.c.b16 %v766, %v763
        %v833 = vpack.c.b16 %v767, %v764
        %v834 = vpack.c.b16 %v768, %v765
        %v835 = vpack.c.b16 %v772, %v769
        %v836 = vpack.c.b16 %v773, %v770
        %v837 = vpack.c.b16 %v774, %v771
        %v838 = vpack.c.b16 %v778, %v775
        %v839 = vpack.c.b16 %v779, %v776
        %v840 = vpack.c.b16 %v780, %v777
        %v841 = vpack.c.b16 %v784, %v781
        %v842 = vpack.c.b16 %v785, %v782
        %v843 = vpack.c.b16 %v786, %v783
        %v844 = vpack.c.b16 %v790, %v787
        %v845 = vpack.c.b16 %v791, %v788
        %v846 = vpack.c.b16 %v792, %v789
        %v847 = vpack.c.b16 %v796, %v793
        %v848 = vpack.c.b16 %v797, %v794
        %v849 = vpack.c.b16 %v798, %v795
        %v850 = vpack.c.b16 %v802, %v799
        %v851 = vpack.c.b16 %v803, %v800
        %v852 = vpack.c.b16 %v804, %v801
        %901 = vmatprep.subr.bf16.mxu0 %v827
        %902 = vmatpush1.bf16.msra.mxu0 %v826
        %903 = vmatprep.subr.bf16.mxu0 %v824
        %904 = vmatpush1.bf16.msra.mxu0 %v823
        %905 = vmatprep.subr.bf16.mxu0 %v821
        %906 = vmatpush1.bf16.msra.mxu0 %v820
        %907 = vmatprep.subr.bf16.mxu0 %v818
        %908 = vmatpush1.bf16.msra.mxu0 %v817
        %909 = vmatprep.subr.bf16.mxu0 %v815
        %910 = vmatpush1.bf16.msra.mxu0 %v814
        %911 = vmatprep.subr.bf16.mxu0 %v812
        %912 = vmatpush1.bf16.msra.mxu0 %v811
        %913 = vmatprep.subr.bf16.mxu0 %v809
        %914 = vmatpush1.bf16.msra.mxu0 %v808
        %915 = vmatprep.subr.bf16.mxu0 %v806
        %916 = vmatpush1.bf16.msra.mxu0 %v805
        %917 = vmatprep.subr.bf16.mxu0 %v851
        %918 = vmatpush2.bf16.msra.mxu0 %v850
        %919 = vmatprep.subr.bf16.mxu0 %v848
        %920 = vmatpush2.bf16.msra.mxu0 %v847
        %921 = vmatprep.subr.bf16.mxu0 %v845
        %922 = vmatpush2.bf16.msra.mxu0 %v844
        %923 = vmatprep.subr.bf16.mxu0 %v842
        %924 = vmatpush2.bf16.msra.mxu0 %v841
        %925 = vmatprep.subr.bf16.mxu0 %v839
        %926 = vmatpush2.bf16.msra.mxu0 %v838
        %927 = vmatprep.subr.bf16.mxu0 %v836
        %928 = vmatpush2.bf16.msra.mxu0 %v835
        %929 = vmatprep.subr.bf16.mxu0 %v833
        %930 = vmatpush2.bf16.msra.mxu0 %v832
        %931 = vmatprep.subr.bf16.mxu0 %v830
        %932 = vmatpush2.bf16.msra.mxu0 %v829
        %933 = vmatprep.mubr.bf16.mxu0 %v614
        %934 = vmatmul.mubr.bf16.gmra.mxu0 %v613
        %v935 = vpop.f32.mrf.mxu0
        %v936 = vadd.f32 %v553, %v935
        %v937 = vpop.f32.mrf.mxu0
        %v938 = vadd.f32 %v557, %v937
        %v939 = vpop.f32.mrf.mxu0
        %v940 = vadd.f32 %v553, %v939
        %v941 = vpop.f32.mrf.mxu0
        %v942 = vadd.f32 %v557, %v941
        %943 = vmatprep.mubr.bf16.mxu0 %v616
        %944 = vmatmul.mubr.bf16.gmra.mxu0 %v615
        %v945 = vpop.f32.mrf.mxu0
        %v946 = vadd.f32 %v553, %v945
        %v947 = vpop.f32.mrf.mxu0
        %v948 = vadd.f32 %v557, %v947
        %v949 = vpop.f32.mrf.mxu0
        %v950 = vadd.f32 %v553, %v949
        %v951 = vpop.f32.mrf.mxu0
        %v952 = vadd.f32 %v557, %v951
        %953 = vmatprep.mubr.bf16.mxu0 %v618
        %954 = vmatmul.mubr.bf16.gmra.mxu0 %v617
        %v955 = vpop.f32.mrf.mxu0
        %v956 = vadd.f32 %v553, %v955
        %v957 = vpop.f32.mrf.mxu0
        %v958 = vadd.f32 %v557, %v957
        %v959 = vpop.f32.mrf.mxu0
        %v960 = vadd.f32 %v553, %v959
        %v961 = vpop.f32.mrf.mxu0
        %v962 = vadd.f32 %v557, %v961
        %963 = vmatprep.mubr.bf16.mxu0 %v620
        %964 = vmatmul.mubr.bf16.gmra.mxu0 %v619
        %v965 = vpop.f32.mrf.mxu0
        %v966 = vadd.f32 %v553, %v965
        %v967 = vpop.f32.mrf.mxu0
        %v968 = vadd.f32 %v557, %v967
        %v969 = vpop.f32.mrf.mxu0
        %v970 = vadd.f32 %v553, %v969
        %v971 = vpop.f32.mrf.mxu0
        %v972 = vadd.f32 %v557, %v971
        %973 = vmatprep.mubr.bf16.mxu0 %v622
        %974 = vmatmul.mubr.bf16.gmra.mxu0 %v621
        %v975 = vpop.f32.mrf.mxu0
        %v976 = vadd.f32 %v553, %v975
        %v977 = vpop.f32.mrf.mxu0
        %v978 = vadd.f32 %v557, %v977
        %v979 = vpop.f32.mrf.mxu0
        %v980 = vadd.f32 %v553, %v979
        %v981 = vpop.f32.mrf.mxu0
        %v982 = vadd.f32 %v557, %v981
        %983 = vmatprep.mubr.bf16.mxu0 %v624
        %984 = vmatmul.mubr.bf16.gmra.mxu0 %v623
        %v985 = vpop.f32.mrf.mxu0
        %v986 = vadd.f32 %v553, %v985
        %v987 = vpop.f32.mrf.mxu0
        %v988 = vadd.f32 %v557, %v987
        %v989 = vpop.f32.mrf.mxu0
        %v990 = vadd.f32 %v553, %v989
        %v991 = vpop.f32.mrf.mxu0
        %v992 = vadd.f32 %v557, %v991
        %993 = vmatprep.mubr.bf16.mxu0 %v626
        %994 = vmatmul.mubr.bf16.gmra.mxu0 %v625
        %v995 = vpop.f32.mrf.mxu0
        %v996 = vadd.f32 %v553, %v995
        %v997 = vpop.f32.mrf.mxu0
        %v998 = vadd.f32 %v557, %v997
        %v999 = vpop.f32.mrf.mxu0
        %v1000 = vadd.f32 %v553, %v999
        %v1001 = vpop.f32.mrf.mxu0
        %v1002 = vadd.f32 %v557, %v1001
        %1003 = vmatprep.mubr.bf16.mxu0 %v628
        %1004 = vmatmul.mubr.bf16.gmra.mxu0 %v627
        %v1005 = vpop.f32.mrf.mxu0
        %v1006 = vadd.f32 %v553, %v1005
        %v1007 = vpop.f32.mrf.mxu0
        %v1008 = vadd.f32 %v557, %v1007
        %v1009 = vpop.f32.mrf.mxu0
        %v1010 = vadd.f32 %v553, %v1009
        %v1011 = vpop.f32.mrf.mxu0
        %v1012 = vadd.f32 %v557, %v1011
        %1013 = vdwg.mxu0
        %1014 = vmatprep.subr.bf16.mxu0 0
        %1015 = vmatpush1.bf16.msra.mxu0 %v828
        %1016 = vmatprep.subr.bf16.mxu0 0
        %1017 = vmatpush1.bf16.msra.mxu0 %v825
        %1018 = vmatprep.subr.bf16.mxu0 0
        %1019 = vmatpush1.bf16.msra.mxu0 %v822
        %1020 = vmatprep.subr.bf16.mxu0 0
        %1021 = vmatpush1.bf16.msra.mxu0 %v819
        %1022 = vmatprep.subr.bf16.mxu0 0
        %1023 = vmatpush1.bf16.msra.mxu0 %v816
        %1024 = vmatprep.subr.bf16.mxu0 0
        %1025 = vmatpush1.bf16.msra.mxu0 %v813
        %1026 = vmatprep.subr.bf16.mxu0 0
        %1027 = vmatpush1.bf16.msra.mxu0 %v810
        %1028 = vmatprep.subr.bf16.mxu0 0
        %1029 = vmatpush1.bf16.msra.mxu0 %v807
        %1030 = vmatprep.subr.bf16.mxu0 0
        %1031 = vmatpush2.bf16.msra.mxu0 %v852
        %1032 = vmatprep.subr.bf16.mxu0 0
        %1033 = vmatpush2.bf16.msra.mxu0 %v849
        %1034 = vmatprep.subr.bf16.mxu0 0
        %1035 = vmatpush2.bf16.msra.mxu0 %v846
        %1036 = vmatprep.subr.bf16.mxu0 0
        %1037 = vmatpush2.bf16.msra.mxu0 %v843
        %1038 = vmatprep.subr.bf16.mxu0 0
        %1039 = vmatpush2.bf16.msra.mxu0 %v840
        %1040 = vmatprep.subr.bf16.mxu0 0
        %1041 = vmatpush2.bf16.msra.mxu0 %v837
        %1042 = vmatprep.subr.bf16.mxu0 0
        %1043 = vmatpush2.bf16.msra.mxu0 %v834
        %1044 = vmatprep.subr.bf16.mxu0 0
        %1045 = vmatpush2.bf16.msra.mxu0 %v831
        %1046 = vmatprep.mubr.bf16.mxu0 %v614
        %1047 = vmatmul.mubr.bf16.gmra.mxu0 %v613
        %v1048 = vpop.f32.mrf.mxu0
        %v1049 = vadd.f32 %v561, %v1048
        %v1050 = vpop.f32.mrf.mxu0
        %v1051 = vpop.f32.mrf.mxu0
        %v1052 = vadd.f32 %v561, %v1051
        %v1053 = vpop.f32.mrf.mxu0
        %1054 = vmatprep.mubr.bf16.mxu0 %v616
        %1055 = vmatmul.mubr.bf16.gmra.mxu0 %v615
        %v1056 = vpop.f32.mrf.mxu0
        %v1057 = vadd.f32 %v561, %v1056
        %v1058 = vpop.f32.mrf.mxu0
        %v1059 = vpop.f32.mrf.mxu0
        %v1060 = vadd.f32 %v561, %v1059
        %v1061 = vpop.f32.mrf.mxu0
        %1062 = vmatprep.mubr.bf16.mxu0 %v618
        %1063 = vmatmul.mubr.bf16.gmra.mxu0 %v617
        %v1064 = vpop.f32.mrf.mxu0
        %v1065 = vadd.f32 %v561, %v1064
        %v1066 = vpop.f32.mrf.mxu0
        %v1067 = vpop.f32.mrf.mxu0
        %v1068 = vadd.f32 %v561, %v1067
        %v1069 = vpop.f32.mrf.mxu0
        %1070 = vmatprep.mubr.bf16.mxu0 %v620
        %1071 = vmatmul.mubr.bf16.gmra.mxu0 %v619
        %v1072 = vpop.f32.mrf.mxu0
        %v1073 = vadd.f32 %v561, %v1072
        %v1074 = vpop.f32.mrf.mxu0
        %v1075 = vpop.f32.mrf.mxu0
        %v1076 = vadd.f32 %v561, %v1075
        %v1077 = vpop.f32.mrf.mxu0
        %1078 = vmatprep.mubr.bf16.mxu0 %v622
        %1079 = vmatmul.mubr.bf16.gmra.mxu0 %v621
        %v1080 = vpop.f32.mrf.mxu0
        %v1081 = vadd.f32 %v561, %v1080
        %v1082 = vpop.f32.mrf.mxu0
        %v1083 = vpop.f32.mrf.mxu0
        %v1084 = vadd.f32 %v561, %v1083
        %v1085 = vpop.f32.mrf.mxu0
        %1086 = vmatprep.mubr.bf16.mxu0 %v624
        %1087 = vmatmul.mubr.bf16.gmra.mxu0 %v623
        %v1088 = vpop.f32.mrf.mxu0
        %v1089 = vadd.f32 %v561, %v1088
        %v1090 = vpop.f32.mrf.mxu0
        %v1091 = vpop.f32.mrf.mxu0
        %v1092 = vadd.f32 %v561, %v1091
        %v1093 = vpop.f32.mrf.mxu0
        %1094 = vmatprep.mubr.bf16.mxu0 %v626
        %1095 = vmatmul.mubr.bf16.gmra.mxu0 %v625
        %v1096 = vpop.f32.mrf.mxu0
        %v1097 = vadd.f32 %v561, %v1096
        %v1098 = vpop.f32.mrf.mxu0
        %v1099 = vpop.f32.mrf.mxu0
        %v1100 = vadd.f32 %v561, %v1099
        %v1101 = vpop.f32.mrf.mxu0
        %1102 = vmatprep.mubr.bf16.mxu0 %v628
        %1103 = vmatmul.mubr.bf16.gmra.mxu0 %v627
        %v1104 = vpop.f32.mrf.mxu0
        %v1105 = vadd.f32 %v561, %v1104
        %v1106 = vpop.f32.mrf.mxu0
        %v1107 = vpop.f32.mrf.mxu0
        %v1108 = vadd.f32 %v561, %v1107
        %v1109 = vpop.f32.mrf.mxu0
        %1110 = vdwg.mxu0
        %v1111 = vmax.f32 %v936, 0.0
        %v1112 = vmax.f32 %v938, 0.0
        %v1113 = vmax.f32 %v1049, 0.0
        %v1114 = vmax.f32 %v940, 0.0
        %v1115 = vmax.f32 %v942, 0.0
        %v1116 = vmax.f32 %v1052, 0.0
        %v1117 = vmax.f32 %v946, 0.0
        %v1118 = vmax.f32 %v948, 0.0
        %v1119 = vmax.f32 %v1057, 0.0
        %v1120 = vmax.f32 %v950, 0.0
        %v1121 = vmax.f32 %v952, 0.0
        %v1122 = vmax.f32 %v1060, 0.0
        %v1123 = vmax.f32 %v956, 0.0
        %v1124 = vmax.f32 %v958, 0.0
        %v1125 = vmax.f32 %v1065, 0.0
        %v1126 = vmax.f32 %v960, 0.0
        %v1127 = vmax.f32 %v962, 0.0
        %v1128 = vmax.f32 %v1068, 0.0
        %v1129 = vmax.f32 %v966, 0.0
        %v1130 = vmax.f32 %v968, 0.0
        %v1131 = vmax.f32 %v1073, 0.0
        %v1132 = vmax.f32 %v970, 0.0
        %v1133 = vmax.f32 %v972, 0.0
        %v1134 = vmax.f32 %v1076, 0.0
        %v1135 = vmax.f32 %v976, 0.0
        %v1136 = vmax.f32 %v978, 0.0
        %v1137 = vmax.f32 %v1081, 0.0
        %v1138 = vmax.f32 %v980, 0.0
        %v1139 = vmax.f32 %v982, 0.0
        %v1140 = vmax.f32 %v1084, 0.0
        %v1141 = vmax.f32 %v986, 0.0
        %v1142 = vmax.f32 %v988, 0.0
        %v1143 = vmax.f32 %v1089, 0.0
        %v1144 = vmax.f32 %v990, 0.0
        %v1145 = vmax.f32 %v992, 0.0
        %v1146 = vmax.f32 %v1092, 0.0
        %v1147 = vmax.f32 %v996, 0.0
        %v1148 = vmax.f32 %v998, 0.0
        %v1149 = vmax.f32 %v1097, 0.0
        %v1150 = vmax.f32 %v1000, 0.0
        %v1151 = vmax.f32 %v1002, 0.0
        %v1152 = vmax.f32 %v1100, 0.0
        %v1153 = vmax.f32 %v1006, 0.0
        %v1154 = vmax.f32 %v1008, 0.0
        %v1155 = vmax.f32 %v1105, 0.0
        %v1156 = vmax.f32 %v1010, 0.0
        %v1157 = vmax.f32 %v1012, 0.0
        %v1158 = vmax.f32 %v1108, 0.0
        %1159 = vst [vmem:[%s423] sm:$0xff] %v1111
        %1160 = vst [vmem:[%s423 + $0x8] sm:$0xff] %v1112
        %1161 = vst [vmem:[%s423 + $0x10] sm:$0xff] %v1113
        %1162 = vst [vmem:[%s423 + $0x18] sm:$0xff] %v1114
        %1163 = vst [vmem:[%s423 + $0x20] sm:$0xff] %v1115
        %1164 = vst [vmem:[%s423 + $0x28] sm:$0xff] %v1116
        %1165 = vst [vmem:[%s423 + $0x30] sm:$0xff] %v1117
        %1166 = vst [vmem:[%s423 + $0x38] sm:$0xff] %v1118
        %1167 = vst [vmem:[%s423 + $0x40] sm:$0xff] %v1119
        %1168 = vst [vmem:[%s423 + $0x48] sm:$0xff] %v1120
        %1169 = vst [vmem:[%s423 + $0x50] sm:$0xff] %v1121
        %1170 = vst [vmem:[%s423 + $0x58] sm:$0xff] %v1122
        %1171 = vst [vmem:[%s423 + $0x60] sm:$0xff] %v1123
        %1172 = vst [vmem:[%s423 + $0x68] sm:$0xff] %v1124
        %1173 = vst [vmem:[%s423 + $0x70] sm:$0xff] %v1125
        %1174 = vst [vmem:[%s423 + $0x78] sm:$0xff] %v1126
        %1175 = vst [vmem:[%s423 + $0x80] sm:$0xff] %v1127
        %1176 = vst [vmem:[%s423 + $0x88] sm:$0xff] %v1128
        %1177 = vst [vmem:[%s423 + $0x90] sm:$0xff] %v1129
        %1178 = vst [vmem:[%s423 + $0x98] sm:$0xff] %v1130
        %1179 = vst [vmem:[%s423 + $0xa0] sm:$0xff] %v1131
        %1180 = vst [vmem:[%s423 + $0xa8] sm:$0xff] %v1132
        %1181 = vst [vmem:[%s423 + $0xb0] sm:$0xff] %v1133
        %1182 = vst [vmem:[%s423 + $0xb8] sm:$0xff] %v1134
        %1183 = vst [vmem:[%s423 + $0xc0] sm:$0xff] %v1135
        %1184 = vst [vmem:[%s423 + $0xc8] sm:$0xff] %v1136
        %1185 = vst [vmem:[%s423 + $0xd0] sm:$0xff] %v1137
        %1186 = vst [vmem:[%s423 + $0xd8] sm:$0xff] %v1138
        %1187 = vst [vmem:[%s423 + $0xe0] sm:$0xff] %v1139
        %1188 = vst [vmem:[%s423 + $0xe8] sm:$0xff] %v1140
        %1189 = vst [vmem:[%s423 + $0xf0] sm:$0xff] %v1141
        %1190 = vst [vmem:[%s423 + $0xf8] sm:$0xff] %v1142
        %1191 = vst [vmem:[%s423 + $0x100] sm:$0xff] %v1143
        %1192 = vst [vmem:[%s423 + $0x108] sm:$0xff] %v1144
        %1193 = vst [vmem:[%s423 + $0x110] sm:$0xff] %v1145
        %1194 = vst [vmem:[%s423 + $0x118] sm:$0xff] %v1146
        %1195 = vst [vmem:[%s423 + $0x120] sm:$0xff] %v1147
        %1196 = vst [vmem:[%s423 + $0x128] sm:$0xff] %v1148
        %1197 = vst [vmem:[%s423 + $0x130] sm:$0xff] %v1149
        %1198 = vst [vmem:[%s423 + $0x138] sm:$0xff] %v1150
        %1199 = vst [vmem:[%s423 + $0x140] sm:$0xff] %v1151
        %1200 = vst [vmem:[%s423 + $0x148] sm:$0xff] %v1152
        %1201 = vst [vmem:[%s423 + $0x150] sm:$0xff] %v1153
        %1202 = vst [vmem:[%s423 + $0x158] sm:$0xff] %v1154
        %1203 = vst [vmem:[%s423 + $0x160] sm:$0xff] %v1155
        %1204 = vst [vmem:[%s423 + $0x168] sm:$0xff] %v1156
        %1205 = vst [vmem:[%s423 + $0x170] sm:$0xff] %v1157
        %1206 = vst [vmem:[%s423 + $0x178] sm:$0xff] %v1158
        %v1207 = vld [vmem:[#allocation2] sm:$0xff]
        %v1208 = vld [vmem:[#allocation2 + $0x8] sm:$0xff]
        %v1209 = vld [vmem:[#allocation2 + $0x10] sm:$0xff]
        %v1210 = vld [vmem:[#allocation2 + $0x18] sm:$0xff]
        %v1211 = vld [vmem:[#allocation2 + $0x20] sm:$0xff]
        %v1212 = vld [vmem:[#allocation2 + $0x28] sm:$0xff]
        %v1213 = vld [vmem:[#allocation2 + $0x30] sm:$0xff]
        %v1214 = vld [vmem:[#allocation2 + $0x38] sm:$0xff]
        %v1215 = vld [vmem:[#allocation2 + $0x40] sm:$0xff]
        %v1216 = vld [vmem:[#allocation2 + $0x48] sm:$0xff]
        %v1217 = vld [vmem:[#allocation2 + $0x50] sm:$0xff]
        %v1218 = vld [vmem:[#allocation2 + $0x58] sm:$0xff]
        %v1219 = vld [vmem:[#allocation2 + $0x60] sm:$0xff]
        %v1220 = vld [vmem:[#allocation2 + $0x68] sm:$0xff]
        %v1221 = vld [vmem:[#allocation2 + $0x70] sm:$0xff]
        %v1222 = vld [vmem:[#allocation2 + $0x78] sm:$0xff]
        %v1223 = vld [vmem:[#allocation2 + $0x80] sm:$0xff]
        %v1224 = vld [vmem:[#allocation2 + $0x88] sm:$0xff]
        %v1225 = vld [vmem:[#allocation2 + $0x90] sm:$0xff]
        %v1226 = vld [vmem:[#allocation2 + $0x98] sm:$0xff]
        %v1227 = vld [vmem:[#allocation2 + $0xa0] sm:$0xff]
        %v1228 = vld [vmem:[#allocation2 + $0xa8] sm:$0xff]
        %v1229 = vld [vmem:[#allocation2 + $0xb0] sm:$0xff]
        %v1230 = vld [vmem:[#allocation2 + $0xb8] sm:$0xff]
        %v1231 = vld [vmem:[#allocation2 + $0xc0] sm:$0xff]
        %v1232 = vld [vmem:[#allocation2 + $0xc8] sm:$0xff]
        %v1233 = vld [vmem:[#allocation2 + $0xd0] sm:$0xff]
        %v1234 = vld [vmem:[#allocation2 + $0xd8] sm:$0xff]
        %v1235 = vld [vmem:[#allocation2 + $0xe0] sm:$0xff]
        %v1236 = vld [vmem:[#allocation2 + $0xe8] sm:$0xff]
        %v1237 = vld [vmem:[#allocation2 + $0xf0] sm:$0xff]
        %v1238 = vld [vmem:[#allocation2 + $0xf8] sm:$0xff]
        %v1239 = vpack.c.bf16 %v1114, %v1111
        %v1240 = vpack.c.bf16 %v1115, %v1112
        %v1241 = vpack.c.bf16 %v1116, %v1113
        %v1242 = vpack.c.bf16 %v1120, %v1117
        %v1243 = vpack.c.bf16 %v1121, %v1118
        %v1244 = vpack.c.bf16 %v1122, %v1119
        %v1245 = vpack.c.bf16 %v1126, %v1123
        %v1246 = vpack.c.bf16 %v1127, %v1124
        %v1247 = vpack.c.bf16 %v1128, %v1125
        %v1248 = vpack.c.bf16 %v1132, %v1129
        %v1249 = vpack.c.bf16 %v1133, %v1130
        %v1250 = vpack.c.bf16 %v1134, %v1131
        %v1251 = vpack.c.bf16 %v1138, %v1135
        %v1252 = vpack.c.bf16 %v1139, %v1136
        %v1253 = vpack.c.bf16 %v1140, %v1137
        %v1254 = vpack.c.bf16 %v1144, %v1141
        %v1255 = vpack.c.bf16 %v1145, %v1142
        %v1256 = vpack.c.bf16 %v1146, %v1143
        %v1257 = vpack.c.bf16 %v1150, %v1147
        %v1258 = vpack.c.bf16 %v1151, %v1148
        %v1259 = vpack.c.bf16 %v1152, %v1149
        %v1260 = vpack.c.bf16 %v1156, %v1153
        %v1261 = vpack.c.bf16 %v1157, %v1154
        %v1262 = vpack.c.bf16 %v1158, %v1155
        %v1263 = vld [vmem:[%s371] sm:$0xff]
        %v1264 = vld [vmem:[%s371 + $0x8] sm:$0xff]
        %v1265 = vld [vmem:[%s371 + $0x10] sm:$0xff]
        %v1266 = vld [vmem:[%s371 + $0x18] sm:$0xff]
        %v1267 = vld [vmem:[%s371 + $0x20] sm:$0xff]
        %v1268 = vld [vmem:[%s371 + $0x28] sm:$0xff]
        %v1269 = vld [vmem:[%s371 + $0x30] sm:$0xff]
        %v1270 = vld [vmem:[%s371 + $0x38] sm:$0xff]
        %v1271 = vld [vmem:[%s371 + $0x40] sm:$0xff]
        %v1272 = vld [vmem:[%s371 + $0x48] sm:$0xff]
        %v1273 = vld [vmem:[%s371 + $0x50] sm:$0xff]
        %v1274 = vld [vmem:[%s371 + $0x58] sm:$0xff]
        %v1275 = vld [vmem:[%s371 + $0x60] sm:$0xff]
        %v1276 = vld [vmem:[%s371 + $0x68] sm:$0xff]
        %v1277 = vld [vmem:[%s371 + $0x70] sm:$0xff]
        %v1278 = vld [vmem:[%s371 + $0x78] sm:$0xff]
        %v1279 = vld [vmem:[%s371 + $0x80] sm:$0xff]
        %v1280 = vld [vmem:[%s371 + $0x88] sm:$0xff]
        %v1281 = vld [vmem:[%s371 + $0x90] sm:$0xff]
        %v1282 = vld [vmem:[%s371 + $0x98] sm:$0xff]
        %v1283 = vld [vmem:[%s371 + $0xa0] sm:$0xff]
        %v1284 = vld [vmem:[%s371 + $0xa8] sm:$0xff]
        %v1285 = vld [vmem:[%s371 + $0xb0] sm:$0xff]
        %v1286 = vld [vmem:[%s371 + $0xb8] sm:$0xff]
        %v1287 = vld [vmem:[%s371 + $0xc0] sm:$0xff]
        %v1288 = vld [vmem:[%s371 + $0xc8] sm:$0xff]
        %v1289 = vld [vmem:[%s371 + $0xd0] sm:$0xff]
        %v1290 = vld [vmem:[%s371 + $0xd8] sm:$0xff]
        %v1291 = vld [vmem:[%s371 + $0xe0] sm:$0xff]
        %v1292 = vld [vmem:[%s371 + $0xe8] sm:$0xff]
        %v1293 = vld [vmem:[%s371 + $0xf0] sm:$0xff]
        %v1294 = vld [vmem:[%s371 + $0xf8] sm:$0xff]
        %v1295 = vld [vmem:[%s371 + $0x100] sm:$0xff]
        %v1296 = vld [vmem:[%s371 + $0x108] sm:$0xff]
        %v1297 = vld [vmem:[%s371 + $0x110] sm:$0xff]
        %v1298 = vld [vmem:[%s371 + $0x118] sm:$0xff]
        %v1299 = vld [vmem:[%s371 + $0x120] sm:$0xff]
        %v1300 = vld [vmem:[%s371 + $0x128] sm:$0xff]
        %v1301 = vld [vmem:[%s371 + $0x130] sm:$0xff]
        %v1302 = vld [vmem:[%s371 + $0x138] sm:$0xff]
        %v1303 = vld [vmem:[%s371 + $0x140] sm:$0xff]
        %v1304 = vld [vmem:[%s371 + $0x148] sm:$0xff]
        %v1305 = vld [vmem:[%s371 + $0x150] sm:$0xff]
        %v1306 = vld [vmem:[%s371 + $0x158] sm:$0xff]
        %v1307 = vld [vmem:[%s371 + $0x160] sm:$0xff]
        %v1308 = vld [vmem:[%s371 + $0x168] sm:$0xff]
        %v1309 = vld [vmem:[%s371 + $0x170] sm:$0xff]
        %v1310 = vld [vmem:[%s371 + $0x178] sm:$0xff]
        %v1359 = vunpack.c.l.b16 %v1263
        %v1360 = vunpack.c.h.b16 %v1263
        %v1361 = vunpack.c.l.b16 %v1264
        %v1362 = vunpack.c.h.b16 %v1264
        %v1363 = vunpack.c.l.b16 %v1265
        %v1364 = vunpack.c.h.b16 %v1265
        %v1365 = vunpack.c.l.b16 %v1266
        %v1366 = vunpack.c.h.b16 %v1266
        %v1367 = vunpack.c.l.b16 %v1267
        %v1368 = vunpack.c.h.b16 %v1267
        %v1369 = vunpack.c.l.b16 %v1268
        %v1370 = vunpack.c.h.b16 %v1268
        %v1371 = vunpack.c.l.b16 %v1269
        %v1372 = vunpack.c.h.b16 %v1269
        %v1373 = vunpack.c.l.b16 %v1270
        %v1374 = vunpack.c.h.b16 %v1270
        %v1375 = vunpack.c.l.b16 %v1271
        %v1376 = vunpack.c.h.b16 %v1271
        %v1377 = vunpack.c.l.b16 %v1272
        %v1378 = vunpack.c.h.b16 %v1272
        %v1379 = vunpack.c.l.b16 %v1273
        %v1380 = vunpack.c.h.b16 %v1273
        %v1381 = vunpack.c.l.b16 %v1274
        %v1382 = vunpack.c.h.b16 %v1274
        %v1383 = vunpack.c.l.b16 %v1275
        %v1384 = vunpack.c.h.b16 %v1275
        %v1385 = vunpack.c.l.b16 %v1276
        %v1386 = vunpack.c.h.b16 %v1276
        %v1387 = vunpack.c.l.b16 %v1277
        %v1388 = vunpack.c.h.b16 %v1277
        %v1389 = vunpack.c.l.b16 %v1278
        %v1390 = vunpack.c.h.b16 %v1278
        %v1391 = vunpack.c.l.b16 %v1279
        %v1392 = vunpack.c.h.b16 %v1279
        %v1393 = vunpack.c.l.b16 %v1280
        %v1394 = vunpack.c.h.b16 %v1280
        %v1395 = vunpack.c.l.b16 %v1281
        %v1396 = vunpack.c.h.b16 %v1281
        %v1397 = vunpack.c.l.b16 %v1282
        %v1398 = vunpack.c.h.b16 %v1282
        %v1399 = vunpack.c.l.b16 %v1283
        %v1400 = vunpack.c.h.b16 %v1283
        %v1401 = vunpack.c.l.b16 %v1284
        %v1402 = vunpack.c.h.b16 %v1284
        %v1403 = vunpack.c.l.b16 %v1285
        %v1404 = vunpack.c.h.b16 %v1285
        %v1405 = vunpack.c.l.b16 %v1286
        %v1406 = vunpack.c.h.b16 %v1286
        %v1407 = vunpack.c.l.b16 %v1287
        %v1408 = vunpack.c.h.b16 %v1287
        %v1409 = vunpack.c.l.b16 %v1288
        %v1410 = vunpack.c.h.b16 %v1288
        %v1411 = vunpack.c.l.b16 %v1289
        %v1412 = vunpack.c.h.b16 %v1289
        %v1413 = vunpack.c.l.b16 %v1290
        %v1414 = vunpack.c.h.b16 %v1290
        %v1415 = vunpack.c.l.b16 %v1291
        %v1416 = vunpack.c.h.b16 %v1291
        %v1417 = vunpack.c.l.b16 %v1292
        %v1418 = vunpack.c.h.b16 %v1292
        %v1419 = vunpack.c.l.b16 %v1293
        %v1420 = vunpack.c.h.b16 %v1293
        %v1421 = vunpack.c.l.b16 %v1294
        %v1422 = vunpack.c.h.b16 %v1294
        %v1423 = vunpack.c.l.b16 %v1295
        %v1424 = vunpack.c.h.b16 %v1295
        %v1425 = vunpack.c.l.b16 %v1296
        %v1426 = vunpack.c.h.b16 %v1296
        %v1427 = vunpack.c.l.b16 %v1297
        %v1428 = vunpack.c.h.b16 %v1297
        %v1429 = vunpack.c.l.b16 %v1298
        %v1430 = vunpack.c.h.b16 %v1298
        %v1431 = vunpack.c.l.b16 %v1299
        %v1432 = vunpack.c.h.b16 %v1299
        %v1433 = vunpack.c.l.b16 %v1300
        %v1434 = vunpack.c.h.b16 %v1300
        %v1435 = vunpack.c.l.b16 %v1301
        %v1436 = vunpack.c.h.b16 %v1301
        %v1437 = vunpack.c.l.b16 %v1302
        %v1438 = vunpack.c.h.b16 %v1302
        %v1439 = vunpack.c.l.b16 %v1303
        %v1440 = vunpack.c.h.b16 %v1303
        %v1441 = vunpack.c.l.b16 %v1304
        %v1442 = vunpack.c.h.b16 %v1304
        %v1443 = vunpack.c.l.b16 %v1305
        %v1444 = vunpack.c.h.b16 %v1305
        %v1445 = vunpack.c.l.b16 %v1306
        %v1446 = vunpack.c.h.b16 %v1306
        %v1447 = vunpack.c.l.b16 %v1307
        %v1448 = vunpack.c.h.b16 %v1307
        %v1449 = vunpack.c.l.b16 %v1308
        %v1450 = vunpack.c.h.b16 %v1308
        %v1451 = vunpack.c.l.b16 %v1309
        %v1452 = vunpack.c.h.b16 %v1309
        %v1453 = vunpack.c.l.b16 %v1310
        %v1454 = vunpack.c.h.b16 %v1310
        %v1455 = vpack.c.b16 %v1361, %v1359
        %v1456 = vpack.c.b16 %v1362, %v1360
        %v1457 = vpack.c.b16 %v1365, %v1363
        %v1458 = vpack.c.b16 %v1366, %v1364
        %v1459 = vpack.c.b16 %v1369, %v1367
        %v1460 = vpack.c.b16 %v1370, %v1368
        %v1461 = vpack.c.b16 %v1373, %v1371
        %v1462 = vpack.c.b16 %v1374, %v1372
        %v1463 = vpack.c.b16 %v1377, %v1375
        %v1464 = vpack.c.b16 %v1378, %v1376
        %v1465 = vpack.c.b16 %v1381, %v1379
        %v1466 = vpack.c.b16 %v1382, %v1380
        %v1467 = vpack.c.b16 %v1385, %v1383
        %v1468 = vpack.c.b16 %v1386, %v1384
        %v1469 = vpack.c.b16 %v1389, %v1387
        %v1470 = vpack.c.b16 %v1390, %v1388
        %v1471 = vpack.c.b16 %v1393, %v1391
        %v1472 = vpack.c.b16 %v1394, %v1392
        %v1473 = vpack.c.b16 %v1397, %v1395
        %v1474 = vpack.c.b16 %v1398, %v1396
        %v1475 = vpack.c.b16 %v1401, %v1399
        %v1476 = vpack.c.b16 %v1402, %v1400
        %v1477 = vpack.c.b16 %v1405, %v1403
        %v1478 = vpack.c.b16 %v1406, %v1404
        %v1479 = vpack.c.b16 %v1409, %v1407
        %v1480 = vpack.c.b16 %v1410, %v1408
        %v1481 = vpack.c.b16 %v1413, %v1411
        %v1482 = vpack.c.b16 %v1414, %v1412
        %v1483 = vpack.c.b16 %v1417, %v1415
        %v1484 = vpack.c.b16 %v1418, %v1416
        %v1485 = vpack.c.b16 %v1421, %v1419
        %v1486 = vpack.c.b16 %v1422, %v1420
        %v1487 = vpack.c.b16 %v1425, %v1423
        %v1488 = vpack.c.b16 %v1426, %v1424
        %v1489 = vpack.c.b16 %v1429, %v1427
        %v1490 = vpack.c.b16 %v1430, %v1428
        %v1491 = vpack.c.b16 %v1433, %v1431
        %v1492 = vpack.c.b16 %v1434, %v1432
        %v1493 = vpack.c.b16 %v1437, %v1435
        %v1494 = vpack.c.b16 %v1438, %v1436
        %v1495 = vpack.c.b16 %v1441, %v1439
        %v1496 = vpack.c.b16 %v1442, %v1440
        %v1497 = vpack.c.b16 %v1445, %v1443
        %v1498 = vpack.c.b16 %v1446, %v1444
        %v1499 = vpack.c.b16 %v1449, %v1447
        %v1500 = vpack.c.b16 %v1450, %v1448
        %v1501 = vpack.c.b16 %v1453, %v1451
        %v1502 = vpack.c.b16 %v1454, %v1452
        %1551 = vmatprep.subr.bf16.mxu0 %v1470
        %1552 = vmatpush1.bf16.msra.mxu0 %v1469
        %1553 = vmatprep.subr.bf16.mxu0 %v1468
        %1554 = vmatpush1.bf16.msra.mxu0 %v1467
        %1555 = vmatprep.subr.bf16.mxu0 %v1466
        %1556 = vmatpush1.bf16.msra.mxu0 %v1465
        %1557 = vmatprep.subr.bf16.mxu0 %v1464
        %1558 = vmatpush1.bf16.msra.mxu0 %v1463
        %1559 = vmatprep.subr.bf16.mxu0 %v1462
        %1560 = vmatpush1.bf16.msra.mxu0 %v1461
        %1561 = vmatprep.subr.bf16.mxu0 %v1460
        %1562 = vmatpush1.bf16.msra.mxu0 %v1459
        %1563 = vmatprep.subr.bf16.mxu0 %v1458
        %1564 = vmatpush1.bf16.msra.mxu0 %v1457
        %1565 = vmatprep.subr.bf16.mxu0 %v1456
        %1566 = vmatpush1.bf16.msra.mxu0 %v1455
        %1567 = vmatprep.subr.bf16.mxu0 %v1486
        %1568 = vmatpush2.bf16.msra.mxu0 %v1485
        %1569 = vmatprep.subr.bf16.mxu0 %v1484
        %1570 = vmatpush2.bf16.msra.mxu0 %v1483
        %1571 = vmatprep.subr.bf16.mxu0 %v1482
        %1572 = vmatpush2.bf16.msra.mxu0 %v1481
        %1573 = vmatprep.subr.bf16.mxu0 %v1480
        %1574 = vmatpush2.bf16.msra.mxu0 %v1479
        %1575 = vmatprep.subr.bf16.mxu0 %v1478
        %1576 = vmatpush2.bf16.msra.mxu0 %v1477
        %1577 = vmatprep.subr.bf16.mxu0 %v1476
        %1578 = vmatpush2.bf16.msra.mxu0 %v1475
        %1579 = vmatprep.subr.bf16.mxu0 %v1474
        %1580 = vmatpush2.bf16.msra.mxu0 %v1473
        %1581 = vmatprep.subr.bf16.mxu0 %v1472
        %1582 = vmatpush2.bf16.msra.mxu0 %v1471
        %1583 = vmatprep.mubr.bf16.mxu0 %v1240
        %1584 = vmatmul.mubr.bf16.gmra.mxu0 %v1239
        %v1585 = vpop.f32.mrf.mxu0
        %v1586 = vadd.f32 0.0, %v1585
        %v1587 = vpop.f32.mrf.mxu0
        %v1588 = vadd.f32 0.0, %v1587
        %v1589 = vpop.f32.mrf.mxu0
        %v1590 = vadd.f32 0.0, %v1589
        %v1591 = vpop.f32.mrf.mxu0
        %v1592 = vadd.f32 0.0, %v1591
        %1593 = vmatprep.mubr.bf16.mxu0 %v1243
        %1594 = vmatmul.mubr.bf16.gmra.mxu0 %v1242
        %v1595 = vpop.f32.mrf.mxu0
        %v1596 = vadd.f32 0.0, %v1595
        %v1597 = vpop.f32.mrf.mxu0
        %v1598 = vadd.f32 0.0, %v1597
        %v1599 = vpop.f32.mrf.mxu0
        %v1600 = vadd.f32 0.0, %v1599
        %v1601 = vpop.f32.mrf.mxu0
        %v1602 = vadd.f32 0.0, %v1601
        %1603 = vmatprep.mubr.bf16.mxu0 %v1246
        %1604 = vmatmul.mubr.bf16.gmra.mxu0 %v1245
        %v1605 = vpop.f32.mrf.mxu0
        %v1606 = vadd.f32 0.0, %v1605
        %v1607 = vpop.f32.mrf.mxu0
        %v1608 = vadd.f32 0.0, %v1607
        %v1609 = vpop.f32.mrf.mxu0
        %v1610 = vadd.f32 0.0, %v1609
        %v1611 = vpop.f32.mrf.mxu0
        %v1612 = vadd.f32 0.0, %v1611
        %1613 = vmatprep.mubr.bf16.mxu0 %v1249
        %1614 = vmatmul.mubr.bf16.gmra.mxu0 %v1248
        %v1615 = vpop.f32.mrf.mxu0
        %v1616 = vadd.f32 0.0, %v1615
        %v1617 = vpop.f32.mrf.mxu0
        %v1618 = vadd.f32 0.0, %v1617
        %v1619 = vpop.f32.mrf.mxu0
        %v1620 = vadd.f32 0.0, %v1619
        %v1621 = vpop.f32.mrf.mxu0
        %v1622 = vadd.f32 0.0, %v1621
        %1623 = vmatprep.mubr.bf16.mxu0 %v1252
        %1624 = vmatmul.mubr.bf16.gmra.mxu0 %v1251
        %v1625 = vpop.f32.mrf.mxu0
        %v1626 = vadd.f32 0.0, %v1625
        %v1627 = vpop.f32.mrf.mxu0
        %v1628 = vadd.f32 0.0, %v1627
        %v1629 = vpop.f32.mrf.mxu0
        %v1630 = vadd.f32 0.0, %v1629
        %v1631 = vpop.f32.mrf.mxu0
        %v1632 = vadd.f32 0.0, %v1631
        %1633 = vmatprep.mubr.bf16.mxu0 %v1255
        %1634 = vmatmul.mubr.bf16.gmra.mxu0 %v1254
        %v1635 = vpop.f32.mrf.mxu0
        %v1636 = vadd.f32 0.0, %v1635
        %v1637 = vpop.f32.mrf.mxu0
        %v1638 = vadd.f32 0.0, %v1637
        %v1639 = vpop.f32.mrf.mxu0
        %v1640 = vadd.f32 0.0, %v1639
        %v1641 = vpop.f32.mrf.mxu0
        %v1642 = vadd.f32 0.0, %v1641
        %1643 = vmatprep.mubr.bf16.mxu0 %v1258
        %1644 = vmatmul.mubr.bf16.gmra.mxu0 %v1257
        %v1645 = vpop.f32.mrf.mxu0
        %v1646 = vadd.f32 0.0, %v1645
        %v1647 = vpop.f32.mrf.mxu0
        %v1648 = vadd.f32 0.0, %v1647
        %v1649 = vpop.f32.mrf.mxu0
        %v1650 = vadd.f32 0.0, %v1649
        %v1651 = vpop.f32.mrf.mxu0
        %v1652 = vadd.f32 0.0, %v1651
        %1653 = vmatprep.mubr.bf16.mxu0 %v1261
        %1654 = vmatmul.mubr.bf16.gmra.mxu0 %v1260
        %v1655 = vpop.f32.mrf.mxu0
        %v1656 = vadd.f32 0.0, %v1655
        %v1657 = vpop.f32.mrf.mxu0
        %v1658 = vadd.f32 0.0, %v1657
        %v1659 = vpop.f32.mrf.mxu0
        %v1660 = vadd.f32 0.0, %v1659
        %v1661 = vpop.f32.mrf.mxu0
        %v1662 = vadd.f32 0.0, %v1661
        %1663 = vdwg.mxu0
        %1664 = vmatprep.subr.bf16.mxu0 %v1502
        %1665 = vmatpush1.bf16.msra.mxu0 %v1501
        %1666 = vmatprep.subr.bf16.mxu0 %v1500
        %1667 = vmatpush1.bf16.msra.mxu0 %v1499
        %1668 = vmatprep.subr.bf16.mxu0 %v1498
        %1669 = vmatpush1.bf16.msra.mxu0 %v1497
        %1670 = vmatprep.subr.bf16.mxu0 %v1496
        %1671 = vmatpush1.bf16.msra.mxu0 %v1495
        %1672 = vmatprep.subr.bf16.mxu0 %v1494
        %1673 = vmatpush1.bf16.msra.mxu0 %v1493
        %1674 = vmatprep.subr.bf16.mxu0 %v1492
        %1675 = vmatpush1.bf16.msra.mxu0 %v1491
        %1676 = vmatprep.subr.bf16.mxu0 %v1490
        %1677 = vmatpush1.bf16.msra.mxu0 %v1489
        %1678 = vmatprep.subr.bf16.mxu0 %v1488
        %1679 = vmatpush1.bf16.msra.mxu0 %v1487
        %1680 = vmatprep.subr.bf16.mxu0 0
        %1681 = vmatpush2.bf16.msra.mxu0 0
        %1682 = vmatprep.subr.bf16.mxu0 0
        %1683 = vmatpush2.bf16.msra.mxu0 0
        %1684 = vmatprep.subr.bf16.mxu0 0
        %1685 = vmatpush2.bf16.msra.mxu0 0
        %1686 = vmatprep.subr.bf16.mxu0 0
        %1687 = vmatpush2.bf16.msra.mxu0 0
        %1688 = vmatprep.subr.bf16.mxu0 0
        %1689 = vmatpush2.bf16.msra.mxu0 0
        %1690 = vmatprep.subr.bf16.mxu0 0
        %1691 = vmatpush2.bf16.msra.mxu0 0
        %1692 = vmatprep.subr.bf16.mxu0 0
        %1693 = vmatpush2.bf16.msra.mxu0 0
        %1694 = vmatprep.subr.bf16.mxu0 0
        %1695 = vmatpush2.bf16.msra.mxu0 0
        %1696 = vmatprep.mubr.bf16.mxu0 0
        %1697 = vmatmul.mubr.bf16.gmra.mxu0 %v1241
        %v1698 = vpop.f32.mrf.mxu0
        %v1699 = vadd.f32 %v1586, %v1698
        %v1700 = vpop.f32.mrf.mxu0
        %v1701 = vadd.f32 %v1588, %v1700
        %v1702 = vpop.f32.mrf.mxu0
        %v1703 = vadd.f32 %v1590, %v1702
        %v1704 = vpop.f32.mrf.mxu0
        %v1705 = vadd.f32 %v1592, %v1704
        %1706 = vmatprep.mubr.bf16.mxu0 0
        %1707 = vmatmul.mubr.bf16.gmra.mxu0 %v1244
        %v1708 = vpop.f32.mrf.mxu0
        %v1709 = vadd.f32 %v1596, %v1708
        %v1710 = vpop.f32.mrf.mxu0
        %v1711 = vadd.f32 %v1598, %v1710
        %v1712 = vpop.f32.mrf.mxu0
        %v1713 = vadd.f32 %v1600, %v1712
        %v1714 = vpop.f32.mrf.mxu0
        %v1715 = vadd.f32 %v1602, %v1714
        %1716 = vmatprep.mubr.bf16.mxu0 0
        %1717 = vmatmul.mubr.bf16.gmra.mxu0 %v1247
        %v1718 = vpop.f32.mrf.mxu0
        %v1719 = vadd.f32 %v1606, %v1718
        %v1720 = vpop.f32.mrf.mxu0
        %v1721 = vadd.f32 %v1608, %v1720
        %v1722 = vpop.f32.mrf.mxu0
        %v1723 = vadd.f32 %v1610, %v1722
        %v1724 = vpop.f32.mrf.mxu0
        %v1725 = vadd.f32 %v1612, %v1724
        %1726 = vmatprep.mubr.bf16.mxu0 0
        %1727 = vmatmul.mubr.bf16.gmra.mxu0 %v1250
        %v1728 = vpop.f32.mrf.mxu0
        %v1729 = vadd.f32 %v1616, %v1728
        %v1730 = vpop.f32.mrf.mxu0
        %v1731 = vadd.f32 %v1618, %v1730
        %v1732 = vpop.f32.mrf.mxu0
        %v1733 = vadd.f32 %v1620, %v1732
        %v1734 = vpop.f32.mrf.mxu0
        %v1735 = vadd.f32 %v1622, %v1734
        %1736 = vmatprep.mubr.bf16.mxu0 0
        %1737 = vmatmul.mubr.bf16.gmra.mxu0 %v1253
        %v1738 = vpop.f32.mrf.mxu0
        %v1739 = vadd.f32 %v1626, %v1738
        %v1740 = vpop.f32.mrf.mxu0
        %v1741 = vadd.f32 %v1628, %v1740
        %v1742 = vpop.f32.mrf.mxu0
        %v1743 = vadd.f32 %v1630, %v1742
        %v1744 = vpop.f32.mrf.mxu0
        %v1745 = vadd.f32 %v1632, %v1744
        %1746 = vmatprep.mubr.bf16.mxu0 0
        %1747 = vmatmul.mubr.bf16.gmra.mxu0 %v1256
        %v1748 = vpop.f32.mrf.mxu0
        %v1749 = vadd.f32 %v1636, %v1748
        %v1750 = vpop.f32.mrf.mxu0
        %v1751 = vadd.f32 %v1638, %v1750
        %v1752 = vpop.f32.mrf.mxu0
        %v1753 = vadd.f32 %v1640, %v1752
        %v1754 = vpop.f32.mrf.mxu0
        %v1755 = vadd.f32 %v1642, %v1754
        %1756 = vmatprep.mubr.bf16.mxu0 0
        %1757 = vmatmul.mubr.bf16.gmra.mxu0 %v1259
        %v1758 = vpop.f32.mrf.mxu0
        %v1759 = vadd.f32 %v1646, %v1758
        %v1760 = vpop.f32.mrf.mxu0
        %v1761 = vadd.f32 %v1648, %v1760
        %v1762 = vpop.f32.mrf.mxu0
        %v1763 = vadd.f32 %v1650, %v1762
        %v1764 = vpop.f32.mrf.mxu0
        %v1765 = vadd.f32 %v1652, %v1764
        %1766 = vmatprep.mubr.bf16.mxu0 0
        %1767 = vmatmul.mubr.bf16.gmra.mxu0 %v1262
        %v1768 = vpop.f32.mrf.mxu0
        %v1769 = vadd.f32 %v1656, %v1768
        %v1770 = vpop.f32.mrf.mxu0
        %v1771 = vadd.f32 %v1658, %v1770
        %v1772 = vpop.f32.mrf.mxu0
        %v1773 = vadd.f32 %v1660, %v1772
        %v1774 = vpop.f32.mrf.mxu0
        %v1775 = vadd.f32 %v1662, %v1774
        %1776 = vdwg.mxu0
        %v1777 = vadd.f32 %v1207, %v1699
        %v1778 = vadd.f32 %v1208, %v1701
        %v1779 = vadd.f32 %v1209, %v1703
        %v1780 = vadd.f32 %v1210, %v1705
        %v1781 = vadd.f32 %v1211, %v1709
        %v1782 = vadd.f32 %v1212, %v1711
        %v1783 = vadd.f32 %v1213, %v1713
        %v1784 = vadd.f32 %v1214, %v1715
        %v1785 = vadd.f32 %v1215, %v1719
        %v1786 = vadd.f32 %v1216, %v1721
        %v1787 = vadd.f32 %v1217, %v1723
        %v1788 = vadd.f32 %v1218, %v1725
        %v1789 = vadd.f32 %v1219, %v1729
        %v1790 = vadd.f32 %v1220, %v1731
        %v1791 = vadd.f32 %v1221, %v1733
        %v1792 = vadd.f32 %v1222, %v1735
        %v1793 = vadd.f32 %v1223, %v1739
        %v1794 = vadd.f32 %v1224, %v1741
        %v1795 = vadd.f32 %v1225, %v1743
        %v1796 = vadd.f32 %v1226, %v1745
        %v1797 = vadd.f32 %v1227, %v1749
        %v1798 = vadd.f32 %v1228, %v1751
        %v1799 = vadd.f32 %v1229, %v1753
        %v1800 = vadd.f32 %v1230, %v1755
        %v1801 = vadd.f32 %v1231, %v1759
        %v1802 = vadd.f32 %v1232, %v1761
        %v1803 = vadd.f32 %v1233, %v1763
        %v1804 = vadd.f32 %v1234, %v1765
        %v1805 = vadd.f32 %v1235, %v1769
        %v1806 = vadd.f32 %v1236, %v1771
        %v1807 = vadd.f32 %v1237, %v1773
        %v1808 = vadd.f32 %v1238, %v1775
        %1809 = vst [vmem:[#allocation2] sm:$0xff] %v1777
        %1810 = vst [vmem:[#allocation2 + $0x8] sm:$0xff] %v1778
        %1811 = vst [vmem:[#allocation2 + $0x10] sm:$0xff] %v1779
        %1812 = vst [vmem:[#allocation2 + $0x18] sm:$0xff] %v1780
        %1813 = vst [vmem:[#allocation2 + $0x20] sm:$0xff] %v1781
        %1814 = vst [vmem:[#allocation2 + $0x28] sm:$0xff] %v1782
        %1815 = vst [vmem:[#allocation2 + $0x30] sm:$0xff] %v1783
        %1816 = vst [vmem:[#allocation2 + $0x38] sm:$0xff] %v1784
        %1817 = vst [vmem:[#allocation2 + $0x40] sm:$0xff] %v1785
        %1818 = vst [vmem:[#allocation2 + $0x48] sm:$0xff] %v1786
        %1819 = vst [vmem:[#allocation2 + $0x50] sm:$0xff] %v1787
        %1820 = vst [vmem:[#allocation2 + $0x58] sm:$0xff] %v1788
        %1821 = vst [vmem:[#allocation2 + $0x60] sm:$0xff] %v1789
        %1822 = vst [vmem:[#allocation2 + $0x68] sm:$0xff] %v1790
        %1823 = vst [vmem:[#allocation2 + $0x70] sm:$0xff] %v1791
        %1824 = vst [vmem:[#allocation2 + $0x78] sm:$0xff] %v1792
        %1825 = vst [vmem:[#allocation2 + $0x80] sm:$0xff] %v1793
        %1826 = vst [vmem:[#allocation2 + $0x88] sm:$0xff] %v1794
        %1827 = vst [vmem:[#allocation2 + $0x90] sm:$0xff] %v1795
        %1828 = vst [vmem:[#allocation2 + $0x98] sm:$0xff] %v1796
        %1829 = vst [vmem:[#allocation2 + $0xa0] sm:$0xff] %v1797
        %1830 = vst [vmem:[#allocation2 + $0xa8] sm:$0xff] %v1798
        %1831 = vst [vmem:[#allocation2 + $0xb0] sm:$0xff] %v1799
        %1832 = vst [vmem:[#allocation2 + $0xb8] sm:$0xff] %v1800
        %1833 = vst [vmem:[#allocation2 + $0xc0] sm:$0xff] %v1801
        %1834 = vst [vmem:[#allocation2 + $0xc8] sm:$0xff] %v1802
        %1835 = vst [vmem:[#allocation2 + $0xd0] sm:$0xff] %v1803
        %1836 = vst [vmem:[#allocation2 + $0xd8] sm:$0xff] %v1804
        %1837 = vst [vmem:[#allocation2 + $0xe0] sm:$0xff] %v1805
        %1838 = vst [vmem:[#allocation2 + $0xe8] sm:$0xff] %v1806
        %1839 = vst [vmem:[#allocation2 + $0xf0] sm:$0xff] %v1807
        %1840 = vst [vmem:[#allocation2 + $0xf8] sm:$0xff] %v1808
        %p1841 = scmp.eq.s32.totalorder %s38, 5
        // Predicated region
        $region65: #{tpu_custom_call.1} parent=39 // pred_check
          %p1842 = pneg %p1841
        $region66: #{tpu_custom_call.1} parent=39 // pred_check_branch
          %1844 = sbr.rel (%p1842) target = $region68
        $region67: #{tpu_custom_call.1} parent=39 // pred_region
          %v1845 = vld [vmem:[#allocation2] sm:$0xff]
          %v1846 = vld [vmem:[#allocation2 + $0x8] sm:$0xff]
          %v1847 = vld [vmem:[#allocation2 + $0x10] sm:$0xff]
          %v1848 = vld [vmem:[#allocation2 + $0x18] sm:$0xff]
          %v1849 = vld [vmem:[#allocation2 + $0x20] sm:$0xff]
          %v1850 = vld [vmem:[#allocation2 + $0x28] sm:$0xff]
          %v1851 = vld [vmem:[#allocation2 + $0x30] sm:$0xff]
          %v1852 = vld [vmem:[#allocation2 + $0x38] sm:$0xff]
          %v1853 = vld [vmem:[#allocation2 + $0x40] sm:$0xff]
          %v1854 = vld [vmem:[#allocation2 + $0x48] sm:$0xff]
          %v1855 = vld [vmem:[#allocation2 + $0x50] sm:$0xff]
          %v1856 = vld [vmem:[#allocation2 + $0x58] sm:$0xff]
          %v1857 = vld [vmem:[#allocation2 + $0x60] sm:$0xff]
          %v1858 = vld [vmem:[#allocation2 + $0x68] sm:$0xff]
          %v1859 = vld [vmem:[#allocation2 + $0x70] sm:$0xff]
          %v1860 = vld [vmem:[#allocation2 + $0x78] sm:$0xff]
          %v1861 = vld [vmem:[#allocation2 + $0x80] sm:$0xff]
          %v1862 = vld [vmem:[#allocation2 + $0x88] sm:$0xff]
          %v1863 = vld [vmem:[#allocation2 + $0x90] sm:$0xff]
          %v1864 = vld [vmem:[#allocation2 + $0x98] sm:$0xff]
          %v1865 = vld [vmem:[#allocation2 + $0xa0] sm:$0xff]
          %v1866 = vld [vmem:[#allocation2 + $0xa8] sm:$0xff]
          %v1867 = vld [vmem:[#allocation2 + $0xb0] sm:$0xff]
          %v1868 = vld [vmem:[#allocation2 + $0xb8] sm:$0xff]
          %v1869 = vld [vmem:[#allocation2 + $0xc0] sm:$0xff]
          %v1870 = vld [vmem:[#allocation2 + $0xc8] sm:$0xff]
          %v1871 = vld [vmem:[#allocation2 + $0xd0] sm:$0xff]
          %v1872 = vld [vmem:[#allocation2 + $0xd8] sm:$0xff]
          %v1873 = vld [vmem:[#allocation2 + $0xe0] sm:$0xff]
          %v1874 = vld [vmem:[#allocation2 + $0xe8] sm:$0xff]
          %v1875 = vld [vmem:[#allocation2 + $0xf0] sm:$0xff]
          %v1876 = vld [vmem:[#allocation2 + $0xf8] sm:$0xff]
          %v1877 = vld [vmem:[#allocation11] sm:$0x3]
          %v1879 = vlaneseq
          %v1880 = vshrl.u32 %v1879, 7
          %v1881 = vsub.s32 0, %v1880
          %v1882 = vrot.slane %v1877, %v1881
          %v1883 = vlaneseq
          %v1884 = vshrl.u32 %v1883, 7
          %v1885 = vsub.s32 1, %v1884
          %v1886 = vrot.slane %v1877, %v1885
          %v1889 = vadd.f32 %v1845, %v1882
          %v1890 = vadd.f32 %v1846, %v1886
          %v1891 = vadd.f32 %v1847, %v1882
          %v1892 = vadd.f32 %v1848, %v1886
          %v1893 = vadd.f32 %v1849, %v1882
          %v1894 = vadd.f32 %v1850, %v1886
          %v1895 = vadd.f32 %v1851, %v1882
          %v1896 = vadd.f32 %v1852, %v1886
          %v1897 = vadd.f32 %v1853, %v1882
          %v1898 = vadd.f32 %v1854, %v1886
          %v1899 = vadd.f32 %v1855, %v1882
          %v1900 = vadd.f32 %v1856, %v1886
          %v1901 = vadd.f32 %v1857, %v1882
          %v1902 = vadd.f32 %v1858, %v1886
          %v1903 = vadd.f32 %v1859, %v1882
          %v1904 = vadd.f32 %v1860, %v1886
          %v1905 = vadd.f32 %v1861, %v1882
          %v1906 = vadd.f32 %v1862, %v1886
          %v1907 = vadd.f32 %v1863, %v1882
          %v1908 = vadd.f32 %v1864, %v1886
          %v1909 = vadd.f32 %v1865, %v1882
          %v1910 = vadd.f32 %v1866, %v1886
          %v1911 = vadd.f32 %v1867, %v1882
          %v1912 = vadd.f32 %v1868, %v1886
          %v1913 = vadd.f32 %v1869, %v1882
          %v1914 = vadd.f32 %v1870, %v1886
          %v1915 = vadd.f32 %v1871, %v1882
          %v1916 = vadd.f32 %v1872, %v1886
          %v1917 = vadd.f32 %v1873, %v1882
          %v1918 = vadd.f32 %v1874, %v1886
          %v1919 = vadd.f32 %v1875, %v1882
          %v1920 = vadd.f32 %v1876, %v1886
          %1921 = vst [vmem:[%s416] sm:$0xff] %v1889
          %1922 = vst [vmem:[%s416 + $0x8] sm:$0xff] %v1890
          %1923 = vst [vmem:[%s416 + $0x10] sm:$0xff] %v1891
          %1924 = vst [vmem:[%s416 + $0x18] sm:$0xff] %v1892
          %1925 = vst [vmem:[%s416 + $0x20] sm:$0xff] %v1893
          %1926 = vst [vmem:[%s416 + $0x28] sm:$0xff] %v1894
          %1927 = vst [vmem:[%s416 + $0x30] sm:$0xff] %v1895
          %1928 = vst [vmem:[%s416 + $0x38] sm:$0xff] %v1896
          %1929 = vst [vmem:[%s416 + $0x40] sm:$0xff] %v1897
          %1930 = vst [vmem:[%s416 + $0x48] sm:$0xff] %v1898
          %1931 = vst [vmem:[%s416 + $0x50] sm:$0xff] %v1899
          %1932 = vst [vmem:[%s416 + $0x58] sm:$0xff] %v1900
          %1933 = vst [vmem:[%s416 + $0x60] sm:$0xff] %v1901
          %1934 = vst [vmem:[%s416 + $0x68] sm:$0xff] %v1902
          %1935 = vst [vmem:[%s416 + $0x70] sm:$0xff] %v1903
          %1936 = vst [vmem:[%s416 + $0x78] sm:$0xff] %v1904
          %1937 = vst [vmem:[%s416 + $0x80] sm:$0xff] %v1905
          %1938 = vst [vmem:[%s416 + $0x88] sm:$0xff] %v1906
          %1939 = vst [vmem:[%s416 + $0x90] sm:$0xff] %v1907
          %1940 = vst [vmem:[%s416 + $0x98] sm:$0xff] %v1908
          %1941 = vst [vmem:[%s416 + $0xa0] sm:$0xff] %v1909
          %1942 = vst [vmem:[%s416 + $0xa8] sm:$0xff] %v1910
          %1943 = vst [vmem:[%s416 + $0xb0] sm:$0xff] %v1911
          %1944 = vst [vmem:[%s416 + $0xb8] sm:$0xff] %v1912
          %1945 = vst [vmem:[%s416 + $0xc0] sm:$0xff] %v1913
          %1946 = vst [vmem:[%s416 + $0xc8] sm:$0xff] %v1914
          %1947 = vst [vmem:[%s416 + $0xd0] sm:$0xff] %v1915
          %1948 = vst [vmem:[%s416 + $0xd8] sm:$0xff] %v1916
          %1949 = vst [vmem:[%s416 + $0xe0] sm:$0xff] %v1917
          %1950 = vst [vmem:[%s416 + $0xe8] sm:$0xff] %v1918
          %1951 = vst [vmem:[%s416 + $0xf0] sm:$0xff] %v1919
          %1952 = vst [vmem:[%s416 + $0xf8] sm:$0xff] %v1920
        $region68: #{tpu_custom_call.1} parent=39 // pred_fallthru
          _
        %s1953 = sand.u32 %s178, 1
        %s1954 = scalar_lea.sflag [#allocation5], %s1953
        %s1955 = sand.u32 %s178, 1
        %s1956 = smul.addr %s1955, 256
        %s1957 = scalar_lea.vmem [#allocation12], %s1956
        %s1958 = sand.u32 %s206, 1
        %s1959 = scalar_lea.sflag [#allocation14], %s1958
        %s1960 = sand.u32 %s206, 1
        %s1961 = smul.addr %s1960, 384
        %s1962 = scalar_lea.vmem [#allocation13], %s1961
        // Predicated region
        $region69: #{tpu_custom_call.1} parent=39 // pred_check
          %p1963 = pneg %p188
        $region70: #{tpu_custom_call.1} parent=39 // pred_check_branch
          %1965 = sbr.rel (%p1963) target = $region72
        $region71: #{tpu_custom_call.1} parent=39 // pred_region
          %s1966 = smul.u32 16, %s37
          %s1968 = ssub.s32 4096, 4096
          %1969 = vsyncadd %s1954, %s1968
          %s1970 = smul.addr %s1966, 2
          %s1971 = smul.addr %s1970, 128
          %s1972 = scalar_lea.hbm %s5, %s1971
          %s1973 = sshll.u32 %s1957, 4
          %s1974 = int_to_ptr.vmem [resolvable:$true] %s1973
          %1979 = dma.vmem_to_hbm [thread:$0]  %s1974, 4096, %s1972, %s1954, 256, 256, 16
        $region72: #{tpu_custom_call.1} parent=39 // pred_fallthru
          _
        // Predicated region
        $region73: #{tpu_custom_call.1} parent=39 // pred_check
          %p1980 = pneg %p216
        $region74: #{tpu_custom_call.1} parent=39 // pred_check_branch
          %1982 = sbr.rel (%p1980) target = $region76
        $region75: #{tpu_custom_call.1} parent=39 // pred_region
          %s1983 = smul.u32 16, %s37
          %s1984 = smul.u32 3, %s38
          %s1986 = ssub.s32 6144, 6144
          %1987 = vsyncadd %s1959, %s1986
          %s1988 = smul.addr %s1983, 18
          %s1989 = sadd.s32 %s1984, %s1988
          %s1990 = smul.addr %s1989, 128
          %s1991 = scalar_lea.hbm %s6, %s1990
          %s1992 = sshll.u32 %s1962, 4
          %s1993 = int_to_ptr.vmem [resolvable:$true] %s1992
          %1998 = dma.vmem_to_hbm [thread:$0]  %s1993, 6144, %s1991, %s1959, 384, 2304, 24
        $region76: #{tpu_custom_call.1} parent=39 // pred_fallthru
          _
      $region40: #{tpu_custom_call.1} parent=5 // pred_fallthru
        _
      %p1999 = scmp.le.s32.totalorder 2, %s28
      // Predicated region
      $region77: #{tpu_custom_call.1} parent=5 // pred_check
        %p2000 = pneg %p1999
      $region78: #{tpu_custom_call.1} parent=5 // pred_check_branch
        %2002 = sbr.rel (%p2000) target = $region80
      $region79: #{tpu_custom_call.1} parent=5 // pred_region
        %s2003 = ssub.s32 %s28, 2
        // Predicated region
        $region81: #{tpu_custom_call.1} parent=79 // pred_check
          %p2004 = pneg %p194
        $region82: #{tpu_custom_call.1} parent=79 // pred_check_branch
          %2006 = sbr.rel (%p2004) target = $region84
        $region83: #{tpu_custom_call.1} parent=79 // pred_region
          %s2007 = sand.u32 %s179, 1
          %s2008 = scalar_lea.sflag [#allocation5], %s2007
          %s2009 = sand.u32 %s179, 1
          %s2010 = smul.addr %s2009, 256
          %s2011 = scalar_lea.vmem [#allocation12], %s2010
          %2012 = dma.done %s2008, 4096
        $region84: #{tpu_custom_call.1} parent=79 // pred_fallthru
          _
        // Predicated region
        $region85: #{tpu_custom_call.1} parent=79 // pred_check
          %p2013 = pneg %p222
        $region86: #{tpu_custom_call.1} parent=79 // pred_check_branch
          %2015 = sbr.rel (%p2013) target = $region88
        $region87: #{tpu_custom_call.1} parent=79 // pred_region
          %s2016 = sand.u32 %s207, 1
          %s2017 = scalar_lea.sflag [#allocation14], %s2016
          %s2018 = sand.u32 %s207, 1
          %s2019 = smul.addr %s2018, 384
          %s2020 = scalar_lea.vmem [#allocation13], %s2019
          %2021 = dma.done %s2017, 6144
        $region88: #{tpu_custom_call.1} parent=79 // pred_fallthru
          _
      $region80: #{tpu_custom_call.1} parent=5 // pred_fallthru
        _
    $region6: #{tpu_custom_call.1} parent=1 // loop_footer
      %s32 = sadd.s32 1, %s28
    $region7: #{tpu_custom_call.1} parent=1 // loop_footer_branch
      %27 = sbr.rel target = $region3
    $region8: #{tpu_custom_call.1} parent=1 // loop_exit
      _
    %2022 = vsyncpa [#allocation4], 1
    %s2023 = scalar_lea.sflag [#allocation4], 1
    %2024 = vsyncpa %s2023, 1
    %2025 = vsyncpa [#allocation7], 1
    %s2026 = scalar_lea.sflag [#allocation7], 1
    %2027 = vsyncpa %s2026, 1
    %2028 = vsyncpa [#allocation10], 1
    %s2029 = scalar_lea.sflag [#allocation10], 1
    %2030 = vsyncpa %s2029, 1
    %2031 = vsyncpa [#allocation5], 1
    %s2032 = scalar_lea.sflag [#allocation5], 1
    %2033 = vsyncpa %s2032, 1
    %2034 = vsyncpa [#allocation14], 1
    %s2035 = scalar_lea.sflag [#allocation14], 1
    %2036 = vsyncpa %s2035, 1

</llo_original>
